<compile_context>
chip_gen: v5e
topology: v5e:2x2
jax: 0.10.0
libtpu: 0.0.40
codegen_flags: <defaults>
</compile_context>

<pallas_src>
import functools

import jax
import jax.numpy as jnp
from jax.experimental import pallas as pl
from jax.experimental.pallas import tpu as pltpu


def _round_up(x, m):
    return -(-x // m) * m


def _vmem_bytes(shape, itemsize):
    """Approximate VMEM footprint of a buffer incl. (sublane, lane) padding."""
    s = list(shape)
    if not s:
        return itemsize
    s[-1] = _round_up(s[-1], 128)
    if len(s) >= 2:
        pack = max(1, 4 // itemsize)          # bf16 packs 2 rows per 32-bit sublane
        s[-2] = _round_up(s[-2], 8 * pack)
    n = 1
    for d in s:
        n *= d
    return n * itemsize


def _compute_tile(xv, w_ref, shift_ref, patch_ref, *, kh, kw, stride,
                  row_block, out_w, apply_relu, out_dtype):
    """One output tile: im2col (if needed) + single MXU matmul + BN shift/ReLU.

    xv:        (in_rows, Wp, Cin)              bf16 halo'd input rows.
    w_ref:     (kh*kw*Cin, cout_tile)          bf16, BN scale folded in.
    shift_ref: (1, 1, cout_tile)               f32 folded BN shift.
    patch_ref: (row_block, out_w, kh*kw*Cin)   bf16 VMEM scratch (None for 1x1).
    """
    cin = xv.shape[-1]
    if kh == 1 and kw == 1:
        a = xv[0:(row_block - 1) * stride + 1:stride,
               0:(out_w - 1) * stride + 1:stride, :]
        a = a.reshape(row_block * out_w, cin)
        k_total = cin
    else:
        # Width (sublane-unaligned) slice hoisted to the outer loop: kw slices,
        # not kh*kw; row offsets (major dim) are cheap.
        for j in range(kw):
            colsj = xv[:, j:j + (out_w - 1) * stride + 1:stride, :]   # (in_rows, out_w, cin)
            for i in range(kh):
                tap = i * kw + j
                patch_ref[:, :, tap * cin:(tap + 1) * cin] = (
                    colsj[i:i + (row_block - 1) * stride + 1:stride])
        k_total = kh * kw * cin
        a = patch_ref[...].reshape(row_block * out_w, k_total)

    acc = jax.lax.dot_general(
        a, w_ref[...],
        dimension_numbers=(((1,), (0,)), ((), ())),
        preferred_element_type=jnp.float32)           # (M, cout_tile) f32
    y = acc.reshape(row_block, out_w, -1) + shift_ref[...]
    if apply_relu:
        y = jnp.maximum(y, 0.0)
    return y.astype(out_dtype)


def _conv_kernel_resident(x_ref, w_ref, shift_ref, o_ref, *scratch, kh, kw,
                          stride, row_block, out_w, in_rows, apply_relu):
    """Input image is VMEM-resident (auto-pipelined by BlockSpec across batch)."""
    patch_ref = scratch[0] if scratch else None
    t = pl.program_id(2)
    row0 = pl.multiple_of(t * (row_block * stride), row_block * stride)
    xv = x_ref[0, pl.ds(row0, in_rows), :, :]          # (in_rows, Wp, Cin)
    o_ref[0] = _compute_tile(
        xv, w_ref, shift_ref, patch_ref, kh=kh, kw=kw, stride=stride,
        row_block=row_block, out_w=out_w, apply_relu=apply_relu,
        out_dtype=o_ref.dtype)


def _conv_kernel_hbm(x_hbm, w_ref, shift_ref, o_ref, xbuf, sem, *scratch, kh,
                     kw, stride, row_block, out_w, in_rows, apply_relu):
    """Input stays in HBM; halo'd row tiles are manually double-buffered."""
    patch_ref = scratch[0] if scratch else None
    n = pl.program_id(0)
    t = pl.program_id(2)
    num_t = pl.num_programs(2)

    def _start(tile, slot):
        row0 = tile * (row_block * stride)
        pltpu.make_async_copy(x_hbm.at[n, pl.ds(row0, in_rows), :, :],
                              xbuf.at[slot], sem.at[slot]).start()

    @pl.when(t == 0)                 # prime the pipeline for this (n, cout) group
    def _():
        _start(0, 0)

    @pl.when(t + 1 < num_t)          # prefetch the next row tile's halo
    def _():
        _start(t + 1, (t + 1) % 2)

    slot = t % 2
    pltpu.make_async_copy(x_hbm.at[n, pl.ds(0, in_rows), :, :],
                          xbuf.at[slot], sem.at[slot]).wait()
    xv = xbuf[slot]                                    # (in_rows, Wp, Cin)
    o_ref[0] = _compute_tile(
        xv, w_ref, shift_ref, patch_ref, kh=kh, kw=kw, stride=stride,
        row_block=row_block, out_w=out_w, apply_relu=apply_relu,
        out_dtype=o_ref.dtype)


def basic_conv(x_nchw, weight_oihw, gamma=None, beta=None, running_mean=None,
               running_var=None, *, stride=1, padding=0, dilation=1, groups=1,
               eps=1e-5, relu=True, bn=True, row_block=None, cout_tile=None,
               input_in_vmem=None):
    """Forward of BasicConv (Conv2d bias=False + BatchNorm2d eval + ReLU)."""
    assert dilation == 1 and groups == 1, \
        "TODO(synk): dilation != 1 / groups != 1 not supported"
    N, Cin, H, W = x_nchw.shape
    Cout, Cin_w, kh, kw = weight_oihw.shape
    assert Cin == Cin_w
    out_h = (H + 2 * padding - kh) // stride + 1
    out_w = (W + 2 * padding - kw) // stride + 1
    assert out_h > 0 and out_w > 0

    # ---- Cout tiling (MXU N dim): 256-wide when Cout allows (v6e/v7x MXU is
    #      2x256x256), otherwise 128 (always right for v5e's 4x128x128).
    coutp = _round_up(Cout, 128)
    if cout_tile is None:
        cout_tile = 256 if coutp % 256 == 0 else 128
    cout_tile = min(cout_tile, coutp)
    assert coutp % cout_tile == 0 and cout_tile % 128 == 0
    n_cout_tiles = coutp // cout_tile

    # ---- Row tiling: keep the f32 accumulator (row_block*out_w, cout_tile)
    #      around <= ~128 KiB (half the 64x4KiB vreg file).
    if row_block is None:
        target_m = max(out_w, (128 * 1024) // (4 * cout_tile))
        row_block = max(1, min(out_h, target_m // out_w))
    row_block = max(1, min(row_block, out_h))
    n_row_tiles = -(-out_h // row_block)
    out_h_p = n_row_tiles * row_block            # padded; sliced off at the end
    in_rows = (row_block - 1) * stride + kh      # halo'd input rows per tile
    K = kh * kw * Cin

    # ---- Parameters: fold BN (eval) scale into the conv weight, keep shift.
    w = jnp.transpose(weight_oihw, (2, 3, 1, 0)).astype(jnp.float32)  # (kh,kw,Cin,Cout)
    if bn:
        scale = gamma.astype(jnp.float32) / jnp.sqrt(
            running_var.astype(jnp.float32) + eps)
        shift = beta.astype(jnp.float32) - running_mean.astype(jnp.float32) * scale
    else:
        scale = jnp.ones((Cout,), jnp.float32)
        shift = jnp.zeros((Cout,), jnp.float32)
    w = w * scale                                                     # fold over Cout
    w = jnp.pad(w, ((0, 0), (0, 0), (0, 0), (0, coutp - Cout)))
    w = w.reshape(K, coutp).astype(jnp.bfloat16)                      # im2col layout
    shift = jnp.pad(shift, (0, coutp - Cout)).reshape(1, 1, coutp).astype(jnp.float32)

    # ---- Input: bf16 NHWC, spatial padding (+extra rows so the padded out_h's
    #      last row tile has a full halo).
    x = jnp.transpose(x_nchw, (0, 2, 3, 1)).astype(jnp.bfloat16)
    rows_needed = (out_h_p - 1) * stride + kh
    extra_rows = max(0, rows_needed - (H + 2 * padding))
    xp = jnp.pad(x, ((0, 0), (padding, padding + extra_rows),
                     (padding, padding), (0, 0)))
    Hp, Wp = xp.shape[1], xp.shape[2]

    need_patch = not (kh == 1 and kw == 1)

    # ---- Choose input path (resident image vs manual halo double-buffer).
    image_bytes = _vmem_bytes((Hp, Wp, Cin), 2)
    if input_in_vmem is None:
        input_in_vmem = 2 * image_bytes <= (16 << 20)

    # ---- VMEM budget -> scoped limit (keeps us honest on v7x's 64 MiB).
    w_b = _vmem_bytes((K, cout_tile), 2)
    sh_b = _vmem_bytes((1, 1, cout_tile), 4)
    out_b = _vmem_bytes((row_block, out_w, cout_tile), 2)
    patch_b = _vmem_bytes((row_block, out_w, K), 2) if need_patch else 0
    acc_b = 4 * row_block * out_w * cout_tile
    in_b = (2 * image_bytes if input_in_vmem
            else 2 * _vmem_bytes((in_rows, Wp, Cin), 2))
    total = in_b + 2 * (w_b + sh_b + out_b) + patch_b + acc_b + (4 << 20)
    vmem_limit = int(min(max(total, 32 << 20), 64 << 20))

    kernel_kwargs = dict(kh=kh, kw=kw, stride=stride, row_block=row_block,
                         out_w=out_w, in_rows=in_rows, apply_relu=relu)
    patch_scratch = ([pltpu.VMEM((row_block, out_w, K), jnp.bfloat16)]
                     if need_patch else [])

    w_spec = pl.BlockSpec((K, cout_tile), lambda n, c, t: (0, c))
    sh_spec = pl.BlockSpec((1, 1, cout_tile), lambda n, c, t: (0, 0, c))
    out_spec = pl.BlockSpec((1, row_block, out_w, cout_tile),
                            lambda n, c, t: (n, t, 0, c))

    if input_in_vmem:
        kernel = functools.partial(_conv_kernel_resident, **kernel_kwargs)
        x_spec = pl.BlockSpec((1, Hp, Wp, Cin), lambda n, c, t: (n, 0, 0, 0))
        scratch = patch_scratch
        dims = ("parallel", "parallel", "parallel")
    else:
        kernel = functools.partial(_conv_kernel_hbm, **kernel_kwargs)
        x_spec = pl.BlockSpec(memory_space=pl.ANY)          # raw HBM ref
        scratch = [pltpu.VMEM((2, in_rows, Wp, Cin), jnp.bfloat16),
                   pltpu.SemaphoreType.DMA((2,))] + patch_scratch
        # The row axis carries the manual double-buffer state -> sequential.
        dims = ("parallel", "parallel", "arbitrary")

    out_nhwc = pl.pallas_call(
        kernel,
        out_shape=jax.ShapeDtypeStruct((N, out_h_p, out_w, coutp), jnp.bfloat16),
        grid_spec=pltpu.PrefetchScalarGridSpec(
            num_scalar_prefetch=0,
            grid=(N, n_cout_tiles, n_row_tiles),
            in_specs=[x_spec, w_spec, sh_spec],
            out_specs=out_spec,
            scratch_shapes=scratch),
        compiler_params=pltpu.CompilerParams(
            dimension_semantics=dims, vmem_limit_bytes=vmem_limit),
    )(xp, w, shift)

    out = out_nhwc[:, :out_h, :, :Cout]                  # drop row / lane padding
    return jnp.transpose(out, (0, 3, 1, 2)).astype(x_nchw.dtype)


def _reference(x_nchw, weight_oihw, gamma, beta, running_mean, running_var,
               *, stride, padding, eps, relu, bn):
    y = jax.lax.conv_general_dilated(
        x_nchw.astype(jnp.float32), weight_oihw.astype(jnp.float32),
        window_strides=(stride, stride),
        padding=((padding, padding), (padding, padding)),
        dimension_numbers=("NCHW", "OIHW", "NCHW"))
    if bn:
        s = (gamma / jnp.sqrt(running_var + eps)).reshape(1, -1, 1, 1)
        b = (beta - running_mean * gamma / jnp.sqrt(running_var + eps)).reshape(1, -1, 1, 1)
        y = y * s + b
    if relu:
        y = jnp.maximum(y, 0.0)
    return y


if __name__ == "__main__":
    key = jax.random.PRNGKey(0)

    # --- Test 1: BasicConv(4, 8, kernel_size=3, stride=1, padding=1) ------------
    N, Cin, H, W = 2, 4, 16, 16
    Cout, Ksz, stride, padding = 8, 3, 1, 1
    kx, kw_, kg, kb, km, kv = jax.random.split(key, 6)
    x = jax.random.normal(kx, (N, Cin, H, W), jnp.float32)
    weight = jax.random.normal(kw_, (Cout, Cin, Ksz, Ksz), jnp.float32) * 0.1
    gamma = 1.0 + 0.1 * jax.random.normal(kg, (Cout,), jnp.float32)
    beta = 0.1 * jax.random.normal(kb, (Cout,), jnp.float32)
    running_mean = 0.1 * jax.random.normal(km, (Cout,), jnp.float32)
    running_var = 1.0 + 0.1 * jax.random.uniform(kv, (Cout,), jnp.float32)

    ref = _reference(x, weight, gamma, beta, running_mean, running_var,
                     stride=stride, padding=padding, eps=1e-5, relu=True, bn=True)

    out = basic_conv(x, weight, gamma, beta, running_mean, running_var,
                     stride=stride, padding=padding, eps=1e-5,
                     relu=True, bn=True, row_block=8)        # 2 row tiles, VMEM path
    out = jax.block_until_ready(out)
    assert out.shape == (N, Cout, H, W)
    assert jnp.allclose(out, ref, atol=3e-2, rtol=3e-2), \
        float(jnp.max(jnp.abs(out - ref)))

    # --- Test 2: BasicConv(4, 16, kernel_size=1, stride=1, padding=0, relu=False)
    Cout2 = 16
    k2w, k2g, k2b, k2m, k2v = jax.random.split(jax.random.PRNGKey(1), 5)
    weight2 = jax.random.normal(k2w, (Cout2, Cin, 1, 1), jnp.float32) * 0.1
    gamma2 = 1.0 + 0.1 * jax.random.normal(k2g, (Cout2,), jnp.float32)
    beta2 = 0.1 * jax.random.normal(k2b, (Cout2,), jnp.float32)
    mean2 = 0.1 * jax.random.normal(k2m, (Cout2,), jnp.float32)
    var2 = 1.0 + 0.1 * jax.random.uniform(k2v, (Cout2,), jnp.float32)

    out2 = basic_conv(x, weight2, gamma2, beta2, mean2, var2,
                      stride=1, padding=0, eps=1e-5, relu=False, bn=True)
    out2 = jax.block_until_ready(out2)
    ref2 = _reference(x, weight2, gamma2, beta2, mean2, var2,
                      stride=1, padding=0, eps=1e-5, relu=False, bn=True)
    assert out2.shape == (N, Cout2, H, W)
    assert jnp.allclose(out2, ref2, atol=3e-2, rtol=3e-2), \
        float(jnp.max(jnp.abs(out2 - ref2)))

    # --- Test 3: same as Test 1, forcing the HBM + manual double-buffered DMA path
    out3 = basic_conv(x, weight, gamma, beta, running_mean, running_var,
                      stride=stride, padding=padding, eps=1e-5,
                      relu=True, bn=True, row_block=8, input_in_vmem=False)
    out3 = jax.block_until_ready(out3)
    assert out3.shape == (N, Cout, H, W)
    assert jnp.allclose(out3, ref, atol=3e-2, rtol=3e-2), \
        float(jnp.max(jnp.abs(out3 - ref)))

    print("KERNEL_OK")
</pallas_src>

<mosaic_0001>
module attributes {stable_mosaic.version = 11 : i64} {
  func.func @_conv_kernel_resident(%arg0: i32, %arg1: i32, %arg2: i32, %arg3: memref<1x18x18x4xbf16, #tpu.memory_space<vmem>>, %arg4: memref<36x128xbf16, #tpu.memory_space<vmem>>, %arg5: memref<1x1x128xf32, #tpu.memory_space<vmem>>, %arg6: memref<1x8x16x128xbf16, #tpu.memory_space<vmem>>, %arg7: memref<8x16x36xbf16, #tpu.memory_space<vmem>>) attributes {dimension_semantics = [#tpu.dimension_semantics<parallel>, #tpu.dimension_semantics<parallel>, #tpu.dimension_semantics<parallel>], iteration_bounds = array<i64: 2, 1, 2>, scalar_prefetch = 0 : i64, scratch_operands = 1 : i64, tpu.core_type = #tpu.core_type<tc>, window_params = [{transform_indices = @transform_0, window_bounds = array<i64: 1, 18, 18, 4>}, {transform_indices = @transform_1, window_bounds = array<i64: 36, 128>}, {transform_indices = @transform_2, window_bounds = array<i64: 1, 1, 128>}, {transform_indices = @transform_3, window_bounds = array<i64: 1, 8, 16, 128>}]} {
    %c8_i32 = arith.constant 8 : i32
    %0 = arith.muli %arg2, %c8_i32 : i32
    %1 = tpu.assume_multiple %0, 8 : i32
    %c0 = arith.constant 0 : index
    %2 = arith.index_cast %1 : i32 to index
    %c0_0 = arith.constant 0 : index
    %c0_1 = arith.constant 0 : index
    %3 = vector.load %arg3[%c0, %2, %c0_0, %c0_1] : memref<1x18x18x4xbf16, #tpu.memory_space<vmem>>, vector<1x10x18x4xbf16>
    %4 = vector.shape_cast %3 : vector<1x10x18x4xbf16> to vector<10x18x4xbf16>
    %5 = vector.extract_strided_slice %4 {offsets = [0, 0, 0], sizes = [10, 16, 4], strides = [1, 1, 1]} : vector<10x18x4xbf16> to vector<10x16x4xbf16>
    %6 = vector.extract_strided_slice %5 {offsets = [0, 0, 0], sizes = [8, 16, 4], strides = [1, 1, 1]} : vector<10x16x4xbf16> to vector<8x16x4xbf16>
    %c0_2 = arith.constant 0 : index
    %c0_3 = arith.constant 0 : index
    %c0_4 = arith.constant 0 : index
    %7 = vector.load %arg7[%c0_2, %c0_3, %c0_4] : memref<8x16x36xbf16, #tpu.memory_space<vmem>>, vector<8x16x4xbf16>
    tpu.vector_store %arg7[%c0_2, %c0_3, %c0_4], %6 {strides = array<i32>} : memref<8x16x36xbf16, #tpu.memory_space<vmem>>, vector<8x16x4xbf16>,
    %8 = vector.extract_strided_slice %5 {offsets = [1, 0, 0], sizes = [8, 16, 4], strides = [1, 1, 1]} : vector<10x16x4xbf16> to vector<8x16x4xbf16>
    %c0_5 = arith.constant 0 : index
    %c0_6 = arith.constant 0 : index
    %c12 = arith.constant 12 : index
    %9 = vector.load %arg7[%c0_5, %c0_6, %c12] : memref<8x16x36xbf16, #tpu.memory_space<vmem>>, vector<8x16x4xbf16>
    tpu.vector_store %arg7[%c0_5, %c0_6, %c12], %8 {strides = array<i32>} : memref<8x16x36xbf16, #tpu.memory_space<vmem>>, vector<8x16x4xbf16>,
    %10 = vector.extract_strided_slice %5 {offsets = [2, 0, 0], sizes = [8, 16, 4], strides = [1, 1, 1]} : vector<10x16x4xbf16> to vector<8x16x4xbf16>
    %c0_7 = arith.constant 0 : index
    %c0_8 = arith.constant 0 : index
    %c24 = arith.constant 24 : index
    %11 = vector.load %arg7[%c0_7, %c0_8, %c24] : memref<8x16x36xbf16, #tpu.memory_space<vmem>>, vector<8x16x4xbf16>
    tpu.vector_store %arg7[%c0_7, %c0_8, %c24], %10 {strides = array<i32>} : memref<8x16x36xbf16, #tpu.memory_space<vmem>>, vector<8x16x4xbf16>,
    %12 = vector.extract_strided_slice %4 {offsets = [0, 1, 0], sizes = [10, 16, 4], strides = [1, 1, 1]} : vector<10x18x4xbf16> to vector<10x16x4xbf16>
    %13 = vector.extract_strided_slice %12 {offsets = [0, 0, 0], sizes = [8, 16, 4], strides = [1, 1, 1]} : vector<10x16x4xbf16> to vector<8x16x4xbf16>
    %c0_9 = arith.constant 0 : index
    %c0_10 = arith.constant 0 : index
    %c4 = arith.constant 4 : index
    %14 = vector.load %arg7[%c0_9, %c0_10, %c4] : memref<8x16x36xbf16, #tpu.memory_space<vmem>>, vector<8x16x4xbf16>
    tpu.vector_store %arg7[%c0_9, %c0_10, %c4], %13 {strides = array<i32>} : memref<8x16x36xbf16, #tpu.memory_space<vmem>>, vector<8x16x4xbf16>,
    %15 = vector.extract_strided_slice %12 {offsets = [1, 0, 0], sizes = [8, 16, 4], strides = [1, 1, 1]} : vector<10x16x4xbf16> to vector<8x16x4xbf16>
    %c0_11 = arith.constant 0 : index
    %c0_12 = arith.constant 0 : index
    %c16 = arith.constant 16 : index
    %16 = vector.load %arg7[%c0_11, %c0_12, %c16] : memref<8x16x36xbf16, #tpu.memory_space<vmem>>, vector<8x16x4xbf16>
    tpu.vector_store %arg7[%c0_11, %c0_12, %c16], %15 {strides = array<i32>} : memref<8x16x36xbf16, #tpu.memory_space<vmem>>, vector<8x16x4xbf16>,
    %17 = vector.extract_strided_slice %12 {offsets = [2, 0, 0], sizes = [8, 16, 4], strides = [1, 1, 1]} : vector<10x16x4xbf16> to vector<8x16x4xbf16>
    %c0_13 = arith.constant 0 : index
    %c0_14 = arith.constant 0 : index
    %c28 = arith.constant 28 : index
    %18 = vector.load %arg7[%c0_13, %c0_14, %c28] : memref<8x16x36xbf16, #tpu.memory_space<vmem>>, vector<8x16x4xbf16>
    tpu.vector_store %arg7[%c0_13, %c0_14, %c28], %17 {strides = array<i32>} : memref<8x16x36xbf16, #tpu.memory_space<vmem>>, vector<8x16x4xbf16>,
    %19 = vector.extract_strided_slice %4 {offsets = [0, 2, 0], sizes = [10, 16, 4], strides = [1, 1, 1]} : vector<10x18x4xbf16> to vector<10x16x4xbf16>
    %20 = vector.extract_strided_slice %19 {offsets = [0, 0, 0], sizes = [8, 16, 4], strides = [1, 1, 1]} : vector<10x16x4xbf16> to vector<8x16x4xbf16>
    %c0_15 = arith.constant 0 : index
    %c0_16 = arith.constant 0 : index
    %c8 = arith.constant 8 : index
    %21 = vector.load %arg7[%c0_15, %c0_16, %c8] : memref<8x16x36xbf16, #tpu.memory_space<vmem>>, vector<8x16x4xbf16>
    tpu.vector_store %arg7[%c0_15, %c0_16, %c8], %20 {strides = array<i32>} : memref<8x16x36xbf16, #tpu.memory_space<vmem>>, vector<8x16x4xbf16>,
    %22 = vector.extract_strided_slice %19 {offsets = [1, 0, 0], sizes = [8, 16, 4], strides = [1, 1, 1]} : vector<10x16x4xbf16> to vector<8x16x4xbf16>
    %c0_17 = arith.constant 0 : index
    %c0_18 = arith.constant 0 : index
    %c20 = arith.constant 20 : index
    %23 = vector.load %arg7[%c0_17, %c0_18, %c20] : memref<8x16x36xbf16, #tpu.memory_space<vmem>>, vector<8x16x4xbf16>
    tpu.vector_store %arg7[%c0_17, %c0_18, %c20], %22 {strides = array<i32>} : memref<8x16x36xbf16, #tpu.memory_space<vmem>>, vector<8x16x4xbf16>,
    %24 = vector.extract_strided_slice %19 {offsets = [2, 0, 0], sizes = [8, 16, 4], strides = [1, 1, 1]} : vector<10x16x4xbf16> to vector<8x16x4xbf16>
    %c0_19 = arith.constant 0 : index
    %c0_20 = arith.constant 0 : index
    %c32 = arith.constant 32 : index
    %25 = vector.load %arg7[%c0_19, %c0_20, %c32] : memref<8x16x36xbf16, #tpu.memory_space<vmem>>, vector<8x16x4xbf16>
    tpu.vector_store %arg7[%c0_19, %c0_20, %c32], %24 {strides = array<i32>} : memref<8x16x36xbf16, #tpu.memory_space<vmem>>, vector<8x16x4xbf16>,
    %c0_21 = arith.constant 0 : index
    %c0_22 = arith.constant 0 : index
    %c0_23 = arith.constant 0 : index
    %26 = vector.load %arg7[%c0_21, %c0_22, %c0_23] : memref<8x16x36xbf16, #tpu.memory_space<vmem>>, vector<8x16x36xbf16>
    %27 = vector.shape_cast %26 : vector<8x16x36xbf16> to vector<128x36xbf16>
    %c0_24 = arith.constant 0 : index
    %c0_25 = arith.constant 0 : index
    %28 = vector.load %arg4[%c0_24, %c0_25] : memref<36x128xbf16, #tpu.memory_space<vmem>>, vector<36x128xbf16>
    %cst = arith.constant dense<0.000000e+00> : vector<128x128xf32>
    %29 = tpu.matmul %27, %28, %cst {dimension_numbers = #tpu.dot_dimension_numbers<[1], [0], [0], [1], [0, 0, 1, 1], [], []>} : vector<128x36xbf16>, vector<36x128xbf16>, vector<128x128xf32> -> vector<128x128xf32>
    %30 = vector.shape_cast %29 : vector<128x128xf32> to vector<8x16x128xf32>
    %c0_26 = arith.constant 0 : index
    %c0_27 = arith.constant 0 : index
    %c0_28 = arith.constant 0 : index
    %31 = vector.load %arg5[%c0_26, %c0_27, %c0_28] : memref<1x1x128xf32, #tpu.memory_space<vmem>>, vector<1x1x128xf32>
    %32 = vector.broadcast %31 : vector<1x1x128xf32> to vector<8x16x128xf32>
    %33 = arith.addf %30, %32 : vector<8x16x128xf32>
    %cst_29 = arith.constant 0.000000e+00 : f32
    %34 = vector.broadcast %cst_29 : f32 to vector<8x16x128xf32>
    %35 = arith.maximumf %33, %34 : vector<8x16x128xf32>
    %36 = arith.truncf %35 : vector<8x16x128xf32> to vector<8x16x128xbf16>
    %c0_30 = arith.constant 0 : index
    %c0_31 = arith.constant 0 : index
    %c0_32 = arith.constant 0 : index
    %c0_33 = arith.constant 0 : index
    %37 = vector.load %arg6[%c0_30, %c0_31, %c0_32, %c0_33] : memref<1x8x16x128xbf16, #tpu.memory_space<vmem>>, vector<1x8x16x128xbf16>
    %38 = vector.shape_cast %37 : vector<1x8x16x128xbf16> to vector<8x16x128xbf16>
    %39 = vector.shape_cast %36 : vector<8x16x128xbf16> to vector<1x8x16x128xbf16>
    tpu.vector_store %arg6[%c0_30, %c0_31, %c0_32, %c0_33], %39 {strides = array<i32>} : memref<1x8x16x128xbf16, #tpu.memory_space<vmem>>, vector<1x8x16x128xbf16>,
    return
  }
  func.func @transform_0(%arg0: i32, %arg1: i32, %arg2: i32) -> (i32, i32, i32, i32) {
    %c0_i32 = arith.constant 0 : i32
    %c0_i32_0 = arith.constant 0 : i32
    %c0_i32_1 = arith.constant 0 : i32
    %c0_i32_2 = arith.constant 0 : i32
    return %arg0, %c0_i32, %c0_i32_0, %c0_i32_1 : i32, i32, i32, i32
  }
  func.func @transform_1(%arg0: i32, %arg1: i32, %arg2: i32) -> (i32, i32) {
    %c0_i32 = arith.constant 0 : i32
    %c0_i32_0 = arith.constant 0 : i32
    return %c0_i32, %arg1 : i32, i32
  }
  func.func @transform_2(%arg0: i32, %arg1: i32, %arg2: i32) -> (i32, i32, i32) {
    %c0_i32 = arith.constant 0 : i32
    %c0_i32_0 = arith.constant 0 : i32
    %c0_i32_1 = arith.constant 0 : i32
    return %c0_i32, %c0_i32_0, %arg1 : i32, i32, i32
  }
  func.func @transform_3(%arg0: i32, %arg1: i32, %arg2: i32) -> (i32, i32, i32, i32) {
    %c0_i32 = arith.constant 0 : i32
    %c0_i32_0 = arith.constant 0 : i32
    return %arg0, %arg2, %c0_i32, %arg1 : i32, i32, i32, i32
  }
}

</mosaic_0001>

<llo_original>
// kernel: tpu_custom_call.1
$region0: #{tpu_custom_call.1}
  #allocation0 [shape = 'u32[]', space=smem, size = 0x4, offset = 0x4, fixed_abs, tag = 'smem constant byte address 0x4 - core index']
  #allocation1 [shape = 'u32[72,128]{1,0:T(1,128)}', space=vmem, size = 0x9000, scoped, tag = 'internal scratch']
  #allocation2 [shape = 'bf16[8,16,36]{2,1,0:T(8,128)(2,1)}', space=vmem, size = 0x8000, scoped, tag = 'scratch operand']
  %s0 = inlined_call_operand.vmem [shape: bf16[2,18,18,4], index: 0, kind: input, shape index: {}]
  %s1 = inlined_call_operand.vmem [shape: bf16[36,128], index: 1, kind: input, shape index: {}]
  %s2 = inlined_call_operand.vmem [shape: f32[1,1,128], index: 2, kind: input, shape index: {}]
  %s3 = inlined_call_operand.hbm [shape: bf16[2,16,16,128], index: 3, kind: output, shape index: {}]
  %s4 = sld [smem:[#allocation0]]
  $region45: #{tpu_custom_call.1} parent=0
    _
  %s6 = ssub.s32 1, %s4
  %s7 = scalar_select 0, %s6, %s4
  $region1: #{tpu_custom_call.1} parent=0
    #allocation3 [shape = 'u8[65536]{0}', space=vmem, size = 0x10000, scoped, tag = 'output window, operand 0']
    #allocation4 [shape = 's32[2]{0}', space=sflag, size = 0x8, scoped, tag = 'scoped memory for tpu_custom_call.1']
    %8 = vsyncpa [#allocation4], 0
    %s9 = scalar_lea.sflag [#allocation4], 1
    %10 = vsyncpa %s9, 0
    loop: start=0, step=1, limit=6
    $region2: #{tpu_custom_call.1} parent=1 // loop_pre_header
      _
    $region3: #{tpu_custom_call.1} parent=1 // loop_header
      %s12 = sphi 0, %s16
      %p13 = scmp.ge.s32.totalorder %s12, 6
      %s19 = sphi 0, %s38
      %s20 = sphi 0, %s34
      %s21 = sphi 0, %s30
      %s22 = sphi 0, %s19
      %s23 = sphi 0, %s20
      %s24 = sphi 0, %s21
      %s25 = sphi 0, %s22
      %s26 = sphi 0, %s23
      %s27 = sphi 0, %s24
      %s41 = sphi 0, %s43
      %s44 = sphi 0, %s41
      %s45 = sphi 0, %s44
      %s61 = sphi 0, %s45
      %s67 = sphi 0, %s69
      %s70 = sphi 0, %s67
      %s71 = sphi 0, %s70
      %s87 = sphi 0, %s71
      %s93 = sphi 0, %s95
      %s96 = sphi 0, %s93
      %s97 = sphi 0, %s96
      %s113 = sphi 0, %s97
      %s123 = sphi 0, %s125
      %s126 = sphi 0, %s123
      %s127 = sphi 0, %s126
      %s143 = sphi 0, %s127
    $region4: #{tpu_custom_call.1} parent=1 // loop_header_branch
      %15 = sbr.rel (%p13) target = $region8
    $region5: #{tpu_custom_call.1} parent=1 // loop_body
      %s17 = ssub.s32 %s12, 1
      %s18 = ssub.s32 %s12, 2
      %s28 = sadd.s32 1, %s21
      %p29 = scmp.ge.s32.totalorder %s28, 2
      %s30 = scalar_select %p29, 0, %s28
      %s31 = sadd.s32 1, %s20
      %s32 = scalar_select %p29, %s31, %s20
      %p33 = scmp.ge.s32.totalorder %s32, 1
      %s34 = scalar_select %p33, 0, %s32
      %s35 = sadd.s32 1, %s19
      %s36 = scalar_select %p33, %s35, %s19
      %p37 = scmp.ge.s32.totalorder %s36, 2
      %s38 = scalar_select %p37, 0, %s36
      %s39 = ssub.s32 %s19, %s38
      %p40 = scmp.eq.s32.totalorder %s39, 0
      %s42 = sadd.s32 %s41, 1
      %s43 = scalar_select %p40, %s41, %s42
      %p46 = pneg %p40
      %p47 = scmp.eq.s32.totalorder %s12, 3
      %p48 = por %p46, %p47
      %p49 = scmp.ne.s32.totalorder %s41, %s44
      %p50 = scmp.eq.s32.totalorder %s12, 0
      %p51 = por %p49, %p50
      %p52 = scmp.ne.s32.totalorder %s41, %s44
      %p53 = scmp.eq.s32.totalorder %s17, 3
      %p54 = por %p52, %p53
      %p55 = scmp.ne.s32.totalorder %s44, %s45
      %p56 = scmp.eq.s32.totalorder %s17, 0
      %p57 = por %p55, %p56
      %p58 = scmp.ne.s32.totalorder %s44, %s45
      %p59 = scmp.eq.s32.totalorder %s18, 3
      %p60 = por %p58, %p59
      %p62 = scmp.ne.s32.totalorder %s45, %s61
      %p63 = scmp.eq.s32.totalorder %s18, 0
      %p64 = por %p62, %p63
      %s65 = ssub.s32 %s20, %s34
      %p66 = scmp.eq.s32.totalorder %s65, 0
      %s68 = sadd.s32 %s67, 1
      %s69 = scalar_select %p66, %s67, %s68
      %p72 = pneg %p66
      %p73 = scmp.eq.s32.totalorder %s12, 3
      %p74 = por %p72, %p73
      %p75 = scmp.ne.s32.totalorder %s67, %s70
      %p76 = scmp.eq.s32.totalorder %s12, 0
      %p77 = por %p75, %p76
      %p78 = scmp.ne.s32.totalorder %s67, %s70
      %p79 = scmp.eq.s32.totalorder %s17, 3
      %p80 = por %p78, %p79
      %p81 = scmp.ne.s32.totalorder %s70, %s71
      %p82 = scmp.eq.s32.totalorder %s17, 0
      %p83 = por %p81, %p82
      %p84 = scmp.ne.s32.totalorder %s70, %s71
      %p85 = scmp.eq.s32.totalorder %s18, 3
      %p86 = por %p84, %p85
      %p88 = scmp.ne.s32.totalorder %s71, %s87
      %p89 = scmp.eq.s32.totalorder %s18, 0
      %p90 = por %p88, %p89
      %s91 = ssub.s32 %s20, %s34
      %p92 = scmp.eq.s32.totalorder %s91, 0
      %s94 = sadd.s32 %s93, 1
      %s95 = scalar_select %p92, %s93, %s94
      %p98 = pneg %p92
      %p99 = scmp.eq.s32.totalorder %s12, 3
      %p100 = por %p98, %p99
      %p101 = scmp.ne.s32.totalorder %s93, %s96
      %p102 = scmp.eq.s32.totalorder %s12, 0
      %p103 = por %p101, %p102
      %p104 = scmp.ne.s32.totalorder %s93, %s96
      %p105 = scmp.eq.s32.totalorder %s17, 3
      %p106 = por %p104, %p105
      %p107 = scmp.ne.s32.totalorder %s96, %s97
      %p108 = scmp.eq.s32.totalorder %s17, 0
      %p109 = por %p107, %p108
      %p110 = scmp.ne.s32.totalorder %s96, %s97
      %p111 = scmp.eq.s32.totalorder %s18, 3
      %p112 = por %p110, %p111
      %p114 = scmp.ne.s32.totalorder %s97, %s113
      %p115 = scmp.eq.s32.totalorder %s18, 0
      %p116 = por %p114, %p115
      %s117 = ssub.s32 %s19, %s38
      %s118 = ssub.s32 %s21, %s30
      %s119 = sor.u32 %s117, %s118
      %s120 = ssub.s32 %s20, %s34
      %s121 = sor.u32 %s119, %s120
      %p122 = scmp.eq.s32.totalorder %s121, 0
      %s124 = sadd.s32 %s123, 1
      %s125 = scalar_select %p122, %s123, %s124
      %p128 = pneg %p122
      %p129 = scmp.eq.s32.totalorder %s12, 3
      %p130 = por %p128, %p129
      %p131 = scmp.ne.s32.totalorder %s123, %s126
      %p132 = scmp.eq.s32.totalorder %s12, 0
      %p133 = por %p131, %p132
      %p134 = scmp.ne.s32.totalorder %s123, %s126
      %p135 = scmp.eq.s32.totalorder %s17, 3
      %p136 = por %p134, %p135
      %p137 = scmp.ne.s32.totalorder %s126, %s127
      %p138 = scmp.eq.s32.totalorder %s17, 0
      %p139 = por %p137, %p138
      %p140 = scmp.ne.s32.totalorder %s126, %s127
      %p141 = scmp.eq.s32.totalorder %s18, 3
      %p142 = por %p140, %p141
      %p144 = scmp.ne.s32.totalorder %s127, %s143
      %p145 = scmp.eq.s32.totalorder %s18, 0
      %p146 = por %p144, %p145
      %p147 = scmp.le.s32.totalorder 1, %s12
      %p148 = scmp.lt.s32.totalorder %s12, 5
      %p149 = pnand %p147, %p148
      %p150 = pneg %p149
      // Predicated region
      $region9: #{tpu_custom_call.1} parent=5 // pred_check
        _
      $region10: #{tpu_custom_call.1} parent=5 // pred_check_branch
        %152 = sbr.rel (%p149) target = $region12
      $region11: #{tpu_custom_call.1} parent=5 // pred_region
        %s153 = ssub.s32 %s12, 1
        // Predicated region
        $region13: #{tpu_custom_call.1} parent=11 // pred_check
          %p154 = pneg %p83
        $region14: #{tpu_custom_call.1} parent=11 // pred_check_branch
          %156 = sbr.rel (%p154) target = $region16
        $region15: #{tpu_custom_call.1} parent=11 // pred_region
          %p157 = scmp.lt.s32.totalorder %s23, 0
          %s158 = scalar_select %p157, %s23, 0
          %s159 = smul.addr %s158, 4
          %s160 = scalar_lea.vmem %s1, %s159
        $region16: #{tpu_custom_call.1} parent=11 // pred_fallthru
          _
        // Predicated region
        $region17: #{tpu_custom_call.1} parent=11 // pred_check
          %p161 = pneg %p109
        $region18: #{tpu_custom_call.1} parent=11 // pred_check_branch
          %163 = sbr.rel (%p161) target = $region20
        $region19: #{tpu_custom_call.1} parent=11 // pred_region
          %p164 = scmp.lt.s32.totalorder %s23, 0
          %s165 = scalar_select %p164, %s23, 0
          %s166 = scalar_lea.vmem %s2, %s165
        $region20: #{tpu_custom_call.1} parent=11 // pred_fallthru
          _
      $region12: #{tpu_custom_call.1} parent=5 // pred_fallthru
        _
      %p167 = scmp.lt.s32.totalorder %s12, 4
      // Predicated region
      $region21: #{tpu_custom_call.1} parent=5 // pred_check
        %p168 = pneg %p167
      $region22: #{tpu_custom_call.1} parent=5 // pred_check_branch
        %170 = sbr.rel (%p168) target = $region24
      $region23: #{tpu_custom_call.1} parent=5 // pred_region
        // Predicated region
        $region25: #{tpu_custom_call.1} parent=23 // pred_check
          %p171 = pneg %p51
        $region26: #{tpu_custom_call.1} parent=23 // pred_check_branch
          %173 = sbr.rel (%p171) target = $region28
        $region27: #{tpu_custom_call.1} parent=23 // pred_region
          %p174 = scmp.lt.s32.totalorder %s19, 1
          %s175 = scalar_select %p174, %s19, 1
          %s176 = smul.addr %s175, 54
          %s177 = smul.addr %s176, 4
          %s178 = scalar_lea.vmem %s0, %s177
        $region28: #{tpu_custom_call.1} parent=23 // pred_fallthru
          _
      $region24: #{tpu_custom_call.1} parent=5 // pred_fallthru
        _
      %p179 = scmp.le.s32.totalorder 1, %s12
      %p180 = scmp.lt.s32.totalorder %s12, 5
      %p181 = pnand %p179, %p180
      %p182 = pneg %p181
      // Predicated region
      $region29: #{tpu_custom_call.1} parent=5 // pred_check
        _
      $region30: #{tpu_custom_call.1} parent=5 // pred_check_branch
        %184 = sbr.rel (%p181) target = $region32
      $region31: #{tpu_custom_call.1} parent=5 // pred_region
        %s185 = ssub.s32 %s12, 1
        %p186 = scmp.lt.s32.totalorder %s22, 1
        %s187 = scalar_select %p186, %s22, 1
        %s188 = smul.addr %s187, 54
        %s189 = smul.addr %s188, 4
        %s190 = scalar_lea.vmem %s0, %s189
        %p191 = pneg %p57
        %p192 = pneg %p54
        %p193 = scmp.lt.s32.totalorder %s23, 0
        %s194 = scalar_select %p193, %s23, 0
        %s195 = smul.addr %s194, 4
        %s196 = scalar_lea.vmem %s1, %s195
        %p197 = pneg %p83
        %p198 = pneg %p80
        %p199 = scmp.lt.s32.totalorder %s23, 0
        %s200 = scalar_select %p199, %s23, 0
        %s201 = scalar_lea.vmem %s2, %s200
        %p202 = pneg %p109
        %p203 = pneg %p106
        %p204 = pneg %p139
        %p205 = pneg %p136
        %s206 = sand.u32 %s126, 1
        %s207 = scalar_lea.sflag [#allocation4], %s206
        %s208 = sand.u32 %s126, 1
        %s209 = smul.addr %s208, 64
        %s210 = scalar_lea.vmem [#allocation3], %s209
        %p211 = scmp.lt.s32.totalorder %s22, 1
        %s212 = scalar_select %p211, %s22, 1
        %s213 = smul.addr %s212, 54
        %s214 = smul.addr %s213, 4
        %s215 = scalar_lea.vmem %s0, %s214
        %p216 = scmp.lt.s32.totalorder %s23, 0
        %s217 = scalar_select %p216, %s23, 0
        %s218 = smul.addr %s217, 4
        %s219 = scalar_lea.vmem %s1, %s218
        %p220 = scmp.lt.s32.totalorder %s23, 0
        %s221 = scalar_select %p220, %s23, 0
        %s222 = scalar_lea.vmem %s2, %s221
        %s223 = smul.u32 8, %s24
        %s225 = smul.u32 %s24, 8
        %s226 = smul.u32 %s225, 3
        %s227 = smul.addr %s226, 4
        %s228 = scalar_lea.vmem %s215, %s227
        %v229 = vld [vmem:[%s228] sm:$0xf]
        %v230 = vld [vmem:[%s228 + $0x4] sm:$0xf]
        %v231 = vld [vmem:[%s228 + $0x8] sm:$0x1]
        %v232 = vld [vmem:[%s228 + $0xc] sm:$0xf]
        %v233 = vld [vmem:[%s228 + $0x10] sm:$0xf]
        %v234 = vld [vmem:[%s228 + $0x14] sm:$0x1]
        %v235 = vld [vmem:[%s228 + $0x18] sm:$0xf]
        %v236 = vld [vmem:[%s228 + $0x1c] sm:$0xf]
        %v237 = vld [vmem:[%s228 + $0x20] sm:$0x1]
        %v238 = vld [vmem:[%s228 + $0x24] sm:$0xf]
        %v239 = vld [vmem:[%s228 + $0x28] sm:$0xf]
        %v240 = vld [vmem:[%s228 + $0x2c] sm:$0x1]
        %v241 = vld [vmem:[%s228 + $0x30] sm:$0xf]
        %v242 = vld [vmem:[%s228 + $0x34] sm:$0xf]
        %v243 = vld [vmem:[%s228 + $0x38] sm:$0x1]
        %v244 = vld [vmem:[%s228 + $0x3c] sm:$0xf]
        %v245 = vld [vmem:[%s228 + $0x40] sm:$0xf]
        %v246 = vld [vmem:[%s228 + $0x44] sm:$0x1]
        %v247 = vld [vmem:[%s228 + $0x48] sm:$0xf]
        %v248 = vld [vmem:[%s228 + $0x4c] sm:$0xf]
        %v249 = vld [vmem:[%s228 + $0x50] sm:$0x1]
        %v250 = vld [vmem:[%s228 + $0x54] sm:$0xf]
        %v251 = vld [vmem:[%s228 + $0x58] sm:$0xf]
        %v252 = vld [vmem:[%s228 + $0x5c] sm:$0x1]
        %v253 = vld [vmem:[%s228 + $0x60] sm:$0xf]
        %v254 = vld [vmem:[%s228 + $0x64] sm:$0xf]
        %v255 = vld [vmem:[%s228 + $0x68] sm:$0x1]
        %v256 = vld [vmem:[%s228 + $0x6c] sm:$0xf]
        %v257 = vld [vmem:[%s228 + $0x70] sm:$0xf]
        %v258 = vld [vmem:[%s228 + $0x74] sm:$0x1]
        %vm259 = vcmask 27648
        %260 = vst.msk [vmem:[#allocation2] sm:$0xf] %vm259, %v229
        %261 = vst.msk [vmem:[#allocation2 + $0x4] sm:$0xf] %vm259, %v230
        %262 = vst.msk [vmem:[#allocation2 + $0x8] sm:$0xf] %vm259, %v232
        %263 = vst.msk [vmem:[#allocation2 + $0xc] sm:$0xf] %vm259, %v233
        %264 = vst.msk [vmem:[#allocation2 + $0x10] sm:$0xf] %vm259, %v235
        %265 = vst.msk [vmem:[#allocation2 + $0x14] sm:$0xf] %vm259, %v236
        %266 = vst.msk [vmem:[#allocation2 + $0x18] sm:$0xf] %vm259, %v238
        %267 = vst.msk [vmem:[#allocation2 + $0x1c] sm:$0xf] %vm259, %v239
        %268 = vst.msk [vmem:[#allocation2 + $0x20] sm:$0xf] %vm259, %v241
        %269 = vst.msk [vmem:[#allocation2 + $0x24] sm:$0xf] %vm259, %v242
        %270 = vst.msk [vmem:[#allocation2 + $0x28] sm:$0xf] %vm259, %v244
        %271 = vst.msk [vmem:[#allocation2 + $0x2c] sm:$0xf] %vm259, %v245
        %272 = vst.msk [vmem:[#allocation2 + $0x30] sm:$0xf] %vm259, %v247
        %273 = vst.msk [vmem:[#allocation2 + $0x34] sm:$0xf] %vm259, %v248
        %274 = vst.msk [vmem:[#allocation2 + $0x38] sm:$0xf] %vm259, %v250
        %275 = vst.msk [vmem:[#allocation2 + $0x3c] sm:$0xf] %vm259, %v251
        %292 = vrot.lane.b32.xlu0 %v232, 12
        %v293 = vpop.permute.xlu0 %292
        %294 = vrot.lane.b32.xlu0 %v233, 12
        %v295 = vpop.permute.xlu0 %294
        %296 = vrot.lane.b32.xlu0 %v235, 12
        %v297 = vpop.permute.xlu0 %296
        %298 = vrot.lane.b32.xlu0 %v236, 12
        %v299 = vpop.permute.xlu0 %298
        %300 = vrot.lane.b32.xlu0 %v238, 12
        %v301 = vpop.permute.xlu0 %300
        %302 = vrot.lane.b32.xlu0 %v239, 12
        %v303 = vpop.permute.xlu0 %302
        %304 = vrot.lane.b32.xlu0 %v241, 12
        %v305 = vpop.permute.xlu0 %304
        %306 = vrot.lane.b32.xlu0 %v242, 12
        %v307 = vpop.permute.xlu0 %306
        %308 = vrot.lane.b32.xlu0 %v244, 12
        %v309 = vpop.permute.xlu0 %308
        %310 = vrot.lane.b32.xlu0 %v245, 12
        %v311 = vpop.permute.xlu0 %310
        %312 = vrot.lane.b32.xlu0 %v247, 12
        %v313 = vpop.permute.xlu0 %312
        %314 = vrot.lane.b32.xlu0 %v248, 12
        %v315 = vpop.permute.xlu0 %314
        %316 = vrot.lane.b32.xlu0 %v250, 12
        %v317 = vpop.permute.xlu0 %316
        %318 = vrot.lane.b32.xlu0 %v251, 12
        %v319 = vpop.permute.xlu0 %318
        %320 = vrot.lane.b32.xlu0 %v253, 12
        %v321 = vpop.permute.xlu0 %320
        %322 = vrot.lane.b32.xlu0 %v254, 12
        %v323 = vpop.permute.xlu0 %322
        %vm340 = vcmask 126048
        %341 = vst.msk [vmem:[#allocation2] sm:$0xf] %vm340, %v293
        %342 = vst.msk [vmem:[#allocation2 + $0x4] sm:$0xf] %vm340, %v295
        %343 = vst.msk [vmem:[#allocation2 + $0x8] sm:$0xf] %vm340, %v297
        %344 = vst.msk [vmem:[#allocation2 + $0xc] sm:$0xf] %vm340, %v299
        %345 = vst.msk [vmem:[#allocation2 + $0x10] sm:$0xf] %vm340, %v301
        %346 = vst.msk [vmem:[#allocation2 + $0x14] sm:$0xf] %vm340, %v303
        %347 = vst.msk [vmem:[#allocation2 + $0x18] sm:$0xf] %vm340, %v305
        %348 = vst.msk [vmem:[#allocation2 + $0x1c] sm:$0xf] %vm340, %v307
        %349 = vst.msk [vmem:[#allocation2 + $0x20] sm:$0xf] %vm340, %v309
        %350 = vst.msk [vmem:[#allocation2 + $0x24] sm:$0xf] %vm340, %v311
        %351 = vst.msk [vmem:[#allocation2 + $0x28] sm:$0xf] %vm340, %v313
        %352 = vst.msk [vmem:[#allocation2 + $0x2c] sm:$0xf] %vm340, %v315
        %353 = vst.msk [vmem:[#allocation2 + $0x30] sm:$0xf] %vm340, %v317
        %354 = vst.msk [vmem:[#allocation2 + $0x34] sm:$0xf] %vm340, %v319
        %355 = vst.msk [vmem:[#allocation2 + $0x38] sm:$0xf] %vm340, %v321
        %356 = vst.msk [vmem:[#allocation2 + $0x3c] sm:$0xf] %vm340, %v323
        %359 = vrot.lane.b32.xlu0 %v235, 24
        %v360 = vpop.permute.xlu0 %359
        %361 = vrot.lane.b32.xlu0 %v236, 24
        %v362 = vpop.permute.xlu0 %361
        %363 = vrot.lane.b32.xlu0 %v238, 24
        %v364 = vpop.permute.xlu0 %363
        %365 = vrot.lane.b32.xlu0 %v239, 24
        %v366 = vpop.permute.xlu0 %365
        %367 = vrot.lane.b32.xlu0 %v241, 24
        %v368 = vpop.permute.xlu0 %367
        %369 = vrot.lane.b32.xlu0 %v242, 24
        %v370 = vpop.permute.xlu0 %369
        %371 = vrot.lane.b32.xlu0 %v244, 24
        %v372 = vpop.permute.xlu0 %371
        %373 = vrot.lane.b32.xlu0 %v245, 24
        %v374 = vpop.permute.xlu0 %373
        %375 = vrot.lane.b32.xlu0 %v247, 24
        %v376 = vpop.permute.xlu0 %375
        %377 = vrot.lane.b32.xlu0 %v248, 24
        %v378 = vpop.permute.xlu0 %377
        %379 = vrot.lane.b32.xlu0 %v250, 24
        %v380 = vpop.permute.xlu0 %379
        %381 = vrot.lane.b32.xlu0 %v251, 24
        %v382 = vpop.permute.xlu0 %381
        %383 = vrot.lane.b32.xlu0 %v253, 24
        %v384 = vpop.permute.xlu0 %383
        %385 = vrot.lane.b32.xlu0 %v254, 24
        %v386 = vpop.permute.xlu0 %385
        %387 = vrot.lane.b32.xlu0 %v256, 24
        %v388 = vpop.permute.xlu0 %387
        %389 = vrot.lane.b32.xlu0 %v257, 24
        %v390 = vpop.permute.xlu0 %389
        %vm407 = vcmask 224448
        %408 = vst.msk [vmem:[#allocation2] sm:$0xf] %vm407, %v360
        %409 = vst.msk [vmem:[#allocation2 + $0x4] sm:$0xf] %vm407, %v362
        %410 = vst.msk [vmem:[#allocation2 + $0x8] sm:$0xf] %vm407, %v364
        %411 = vst.msk [vmem:[#allocation2 + $0xc] sm:$0xf] %vm407, %v366
        %412 = vst.msk [vmem:[#allocation2 + $0x10] sm:$0xf] %vm407, %v368
        %413 = vst.msk [vmem:[#allocation2 + $0x14] sm:$0xf] %vm407, %v370
        %414 = vst.msk [vmem:[#allocation2 + $0x18] sm:$0xf] %vm407, %v372
        %415 = vst.msk [vmem:[#allocation2 + $0x1c] sm:$0xf] %vm407, %v374
        %416 = vst.msk [vmem:[#allocation2 + $0x20] sm:$0xf] %vm407, %v376
        %417 = vst.msk [vmem:[#allocation2 + $0x24] sm:$0xf] %vm407, %v378
        %418 = vst.msk [vmem:[#allocation2 + $0x28] sm:$0xf] %vm407, %v380
        %419 = vst.msk [vmem:[#allocation2 + $0x2c] sm:$0xf] %vm407, %v382
        %420 = vst.msk [vmem:[#allocation2 + $0x30] sm:$0xf] %vm407, %v384
        %421 = vst.msk [vmem:[#allocation2 + $0x34] sm:$0xf] %vm407, %v386
        %422 = vst.msk [vmem:[#allocation2 + $0x38] sm:$0xf] %vm407, %v388
        %423 = vst.msk [vmem:[#allocation2 + $0x3c] sm:$0xf] %vm407, %v390
        %vm424 = vsmask.f32 3328
        %vm425 = vsmask.f32 7440
        %vm426 = vmor %vm424, %vm425
        %v428 = vshrl.u32 %v229, 16
        %v430 = vrot.slane %v428, 4
        %v431 = vshll.u32 %v229, 16
        %v433 = vrot.slane %v431, 5
        %v434 = vor.u32 %v430, %v433
        %v435 = vrot.slane %v434, 4
        %v437 = vshll.u32 %v230, 16
        %v439 = vrot.slane %v437, 5
        %v440 = vsel %vm426, %v435, %v439
        %v441 = vshrl.u32 %v230, 16
        %v443 = vrot.slane %v441, 4
        %v444 = vor.u32 %v443, %v439
        %v445 = vrot.slane %v444, 4
        %v447 = vshll.u32 %v231, 16
        %v449 = vrot.slane %v447, 5
        %v450 = vsel %vm426, %v445, %v449
        %v452 = vshrl.u32 %v232, 16
        %v454 = vrot.slane %v452, 4
        %v455 = vshll.u32 %v232, 16
        %v457 = vrot.slane %v455, 5
        %v458 = vor.u32 %v454, %v457
        %v459 = vrot.slane %v458, 4
        %v461 = vshll.u32 %v233, 16
        %v463 = vrot.slane %v461, 5
        %v464 = vsel %vm426, %v459, %v463
        %v465 = vshrl.u32 %v233, 16
        %v467 = vrot.slane %v465, 4
        %v468 = vor.u32 %v467, %v463
        %v469 = vrot.slane %v468, 4
        %v471 = vshll.u32 %v234, 16
        %v473 = vrot.slane %v471, 5
        %v474 = vsel %vm426, %v469, %v473
        %v476 = vshrl.u32 %v235, 16
        %v478 = vrot.slane %v476, 4
        %v479 = vshll.u32 %v235, 16
        %v481 = vrot.slane %v479, 5
        %v482 = vor.u32 %v478, %v481
        %v483 = vrot.slane %v482, 4
        %v485 = vshll.u32 %v236, 16
        %v487 = vrot.slane %v485, 5
        %v488 = vsel %vm426, %v483, %v487
        %v489 = vshrl.u32 %v236, 16
        %v491 = vrot.slane %v489, 4
        %v492 = vor.u32 %v491, %v487
        %v493 = vrot.slane %v492, 4
        %v495 = vshll.u32 %v237, 16
        %v497 = vrot.slane %v495, 5
        %v498 = vsel %vm426, %v493, %v497
        %v500 = vshrl.u32 %v238, 16
        %v502 = vrot.slane %v500, 4
        %v503 = vshll.u32 %v238, 16
        %v505 = vrot.slane %v503, 5
        %v506 = vor.u32 %v502, %v505
        %v507 = vrot.slane %v506, 4
        %v509 = vshll.u32 %v239, 16
        %v511 = vrot.slane %v509, 5
        %v512 = vsel %vm426, %v507, %v511
        %v513 = vshrl.u32 %v239, 16
        %v515 = vrot.slane %v513, 4
        %v516 = vor.u32 %v515, %v511
        %v517 = vrot.slane %v516, 4
        %v519 = vshll.u32 %v240, 16
        %v521 = vrot.slane %v519, 5
        %v522 = vsel %vm426, %v517, %v521
        %v524 = vshrl.u32 %v241, 16
        %v526 = vrot.slane %v524, 4
        %v527 = vshll.u32 %v241, 16
        %v529 = vrot.slane %v527, 5
        %v530 = vor.u32 %v526, %v529
        %v531 = vrot.slane %v530, 4
        %v533 = vshll.u32 %v242, 16
        %v535 = vrot.slane %v533, 5
        %v536 = vsel %vm426, %v531, %v535
        %v537 = vshrl.u32 %v242, 16
        %v539 = vrot.slane %v537, 4
        %v540 = vor.u32 %v539, %v535
        %v541 = vrot.slane %v540, 4
        %v543 = vshll.u32 %v243, 16
        %v545 = vrot.slane %v543, 5
        %v546 = vsel %vm426, %v541, %v545
        %v548 = vshrl.u32 %v244, 16
        %v550 = vrot.slane %v548, 4
        %v551 = vshll.u32 %v244, 16
        %v553 = vrot.slane %v551, 5
        %v554 = vor.u32 %v550, %v553
        %v555 = vrot.slane %v554, 4
        %v557 = vshll.u32 %v245, 16
        %v559 = vrot.slane %v557, 5
        %v560 = vsel %vm426, %v555, %v559
        %v561 = vshrl.u32 %v245, 16
        %v563 = vrot.slane %v561, 4
        %v564 = vor.u32 %v563, %v559
        %v565 = vrot.slane %v564, 4
        %v567 = vshll.u32 %v246, 16
        %v569 = vrot.slane %v567, 5
        %v570 = vsel %vm426, %v565, %v569
        %v572 = vshrl.u32 %v247, 16
        %v574 = vrot.slane %v572, 4
        %v575 = vshll.u32 %v247, 16
        %v577 = vrot.slane %v575, 5
        %v578 = vor.u32 %v574, %v577
        %v579 = vrot.slane %v578, 4
        %v581 = vshll.u32 %v248, 16
        %v583 = vrot.slane %v581, 5
        %v584 = vsel %vm426, %v579, %v583
        %v585 = vshrl.u32 %v248, 16
        %v587 = vrot.slane %v585, 4
        %v588 = vor.u32 %v587, %v583
        %v589 = vrot.slane %v588, 4
        %v591 = vshll.u32 %v249, 16
        %v593 = vrot.slane %v591, 5
        %v594 = vsel %vm426, %v589, %v593
        %v596 = vshrl.u32 %v250, 16
        %v598 = vrot.slane %v596, 4
        %v599 = vshll.u32 %v250, 16
        %v601 = vrot.slane %v599, 5
        %v602 = vor.u32 %v598, %v601
        %v603 = vrot.slane %v602, 4
        %v605 = vshll.u32 %v251, 16
        %v607 = vrot.slane %v605, 5
        %v608 = vsel %vm426, %v603, %v607
        %v609 = vshrl.u32 %v251, 16
        %v611 = vrot.slane %v609, 4
        %v612 = vor.u32 %v611, %v607
        %v613 = vrot.slane %v612, 4
        %v615 = vshll.u32 %v252, 16
        %v617 = vrot.slane %v615, 5
        %v618 = vsel %vm426, %v613, %v617
        %619 = vrot.lane.b32.xlu0 %v440, 4
        %v620 = vpop.permute.xlu0 %619
        %621 = vrot.lane.b32.xlu0 %v450, 4
        %v622 = vpop.permute.xlu0 %621
        %623 = vrot.lane.b32.xlu0 %v464, 4
        %v624 = vpop.permute.xlu0 %623
        %625 = vrot.lane.b32.xlu0 %v474, 4
        %v626 = vpop.permute.xlu0 %625
        %627 = vrot.lane.b32.xlu0 %v488, 4
        %v628 = vpop.permute.xlu0 %627
        %629 = vrot.lane.b32.xlu0 %v498, 4
        %v630 = vpop.permute.xlu0 %629
        %631 = vrot.lane.b32.xlu0 %v512, 4
        %v632 = vpop.permute.xlu0 %631
        %633 = vrot.lane.b32.xlu0 %v522, 4
        %v634 = vpop.permute.xlu0 %633
        %635 = vrot.lane.b32.xlu0 %v536, 4
        %v636 = vpop.permute.xlu0 %635
        %637 = vrot.lane.b32.xlu0 %v546, 4
        %v638 = vpop.permute.xlu0 %637
        %639 = vrot.lane.b32.xlu0 %v560, 4
        %v640 = vpop.permute.xlu0 %639
        %641 = vrot.lane.b32.xlu0 %v570, 4
        %v642 = vpop.permute.xlu0 %641
        %643 = vrot.lane.b32.xlu0 %v584, 4
        %v644 = vpop.permute.xlu0 %643
        %645 = vrot.lane.b32.xlu0 %v594, 4
        %v646 = vpop.permute.xlu0 %645
        %647 = vrot.lane.b32.xlu0 %v608, 4
        %v648 = vpop.permute.xlu0 %647
        %649 = vrot.lane.b32.xlu0 %v618, 4
        %v650 = vpop.permute.xlu0 %649
        %vm667 = vcmask 60448
        %668 = vst.msk [vmem:[#allocation2] sm:$0xf] %vm667, %v620
        %669 = vst.msk [vmem:[#allocation2 + $0x4] sm:$0xf] %vm667, %v622
        %670 = vst.msk [vmem:[#allocation2 + $0x8] sm:$0xf] %vm667, %v624
        %671 = vst.msk [vmem:[#allocation2 + $0xc] sm:$0xf] %vm667, %v626
        %672 = vst.msk [vmem:[#allocation2 + $0x10] sm:$0xf] %vm667, %v628
        %673 = vst.msk [vmem:[#allocation2 + $0x14] sm:$0xf] %vm667, %v630
        %674 = vst.msk [vmem:[#allocation2 + $0x18] sm:$0xf] %vm667, %v632
        %675 = vst.msk [vmem:[#allocation2 + $0x1c] sm:$0xf] %vm667, %v634
        %676 = vst.msk [vmem:[#allocation2 + $0x20] sm:$0xf] %vm667, %v636
        %677 = vst.msk [vmem:[#allocation2 + $0x24] sm:$0xf] %vm667, %v638
        %678 = vst.msk [vmem:[#allocation2 + $0x28] sm:$0xf] %vm667, %v640
        %679 = vst.msk [vmem:[#allocation2 + $0x2c] sm:$0xf] %vm667, %v642
        %680 = vst.msk [vmem:[#allocation2 + $0x30] sm:$0xf] %vm667, %v644
        %681 = vst.msk [vmem:[#allocation2 + $0x34] sm:$0xf] %vm667, %v646
        %682 = vst.msk [vmem:[#allocation2 + $0x38] sm:$0xf] %vm667, %v648
        %683 = vst.msk [vmem:[#allocation2 + $0x3c] sm:$0xf] %vm667, %v650
        %v685 = vshrl.u32 %v253, 16
        %v687 = vrot.slane %v685, 4
        %v688 = vshll.u32 %v253, 16
        %v690 = vrot.slane %v688, 5
        %v691 = vor.u32 %v687, %v690
        %v692 = vrot.slane %v691, 4
        %v694 = vshll.u32 %v254, 16
        %v696 = vrot.slane %v694, 5
        %v697 = vsel %vm426, %v692, %v696
        %v698 = vshrl.u32 %v254, 16
        %v700 = vrot.slane %v698, 4
        %v701 = vor.u32 %v700, %v696
        %v702 = vrot.slane %v701, 4
        %v704 = vshll.u32 %v255, 16
        %v706 = vrot.slane %v704, 5
        %v707 = vsel %vm426, %v702, %v706
        %708 = vrot.lane.b32.xlu0 %v464, 16
        %v709 = vpop.permute.xlu0 %708
        %710 = vrot.lane.b32.xlu0 %v474, 16
        %v711 = vpop.permute.xlu0 %710
        %712 = vrot.lane.b32.xlu0 %v488, 16
        %v713 = vpop.permute.xlu0 %712
        %714 = vrot.lane.b32.xlu0 %v498, 16
        %v715 = vpop.permute.xlu0 %714
        %716 = vrot.lane.b32.xlu0 %v512, 16
        %v717 = vpop.permute.xlu0 %716
        %718 = vrot.lane.b32.xlu0 %v522, 16
        %v719 = vpop.permute.xlu0 %718
        %720 = vrot.lane.b32.xlu0 %v536, 16
        %v721 = vpop.permute.xlu0 %720
        %722 = vrot.lane.b32.xlu0 %v546, 16
        %v723 = vpop.permute.xlu0 %722
        %724 = vrot.lane.b32.xlu0 %v560, 16
        %v725 = vpop.permute.xlu0 %724
        %726 = vrot.lane.b32.xlu0 %v570, 16
        %v727 = vpop.permute.xlu0 %726
        %728 = vrot.lane.b32.xlu0 %v584, 16
        %v729 = vpop.permute.xlu0 %728
        %730 = vrot.lane.b32.xlu0 %v594, 16
        %v731 = vpop.permute.xlu0 %730
        %732 = vrot.lane.b32.xlu0 %v608, 16
        %v733 = vpop.permute.xlu0 %732
        %734 = vrot.lane.b32.xlu0 %v618, 16
        %v735 = vpop.permute.xlu0 %734
        %736 = vrot.lane.b32.xlu0 %v697, 16
        %v737 = vpop.permute.xlu0 %736
        %738 = vrot.lane.b32.xlu0 %v707, 16
        %v739 = vpop.permute.xlu0 %738
        %vm756 = vcmask 158848
        %757 = vst.msk [vmem:[#allocation2] sm:$0xf] %vm756, %v709
        %758 = vst.msk [vmem:[#allocation2 + $0x4] sm:$0xf] %vm756, %v711
        %759 = vst.msk [vmem:[#allocation2 + $0x8] sm:$0xf] %vm756, %v713
        %760 = vst.msk [vmem:[#allocation2 + $0xc] sm:$0xf] %vm756, %v715
        %761 = vst.msk [vmem:[#allocation2 + $0x10] sm:$0xf] %vm756, %v717
        %762 = vst.msk [vmem:[#allocation2 + $0x14] sm:$0xf] %vm756, %v719
        %763 = vst.msk [vmem:[#allocation2 + $0x18] sm:$0xf] %vm756, %v721
        %764 = vst.msk [vmem:[#allocation2 + $0x1c] sm:$0xf] %vm756, %v723
        %765 = vst.msk [vmem:[#allocation2 + $0x20] sm:$0xf] %vm756, %v725
        %766 = vst.msk [vmem:[#allocation2 + $0x24] sm:$0xf] %vm756, %v727
        %767 = vst.msk [vmem:[#allocation2 + $0x28] sm:$0xf] %vm756, %v729
        %768 = vst.msk [vmem:[#allocation2 + $0x2c] sm:$0xf] %vm756, %v731
        %769 = vst.msk [vmem:[#allocation2 + $0x30] sm:$0xf] %vm756, %v733
        %770 = vst.msk [vmem:[#allocation2 + $0x34] sm:$0xf] %vm756, %v735
        %771 = vst.msk [vmem:[#allocation2 + $0x38] sm:$0xf] %vm756, %v737
        %772 = vst.msk [vmem:[#allocation2 + $0x3c] sm:$0xf] %vm756, %v739
        %v774 = vshrl.u32 %v256, 16
        %v776 = vrot.slane %v774, 4
        %v777 = vshll.u32 %v256, 16
        %v779 = vrot.slane %v777, 5
        %v780 = vor.u32 %v776, %v779
        %v781 = vrot.slane %v780, 4
        %v783 = vshll.u32 %v257, 16
        %v785 = vrot.slane %v783, 5
        %v786 = vsel %vm426, %v781, %v785
        %v787 = vshrl.u32 %v257, 16
        %v789 = vrot.slane %v787, 4
        %v790 = vor.u32 %v789, %v785
        %v791 = vrot.slane %v790, 4
        %v793 = vshll.u32 %v258, 16
        %v795 = vrot.slane %v793, 5
        %v796 = vsel %vm426, %v791, %v795
        %797 = vrot.lane.b32.xlu0 %v488, 28
        %v798 = vpop.permute.xlu0 %797
        %799 = vrot.lane.b32.xlu0 %v498, 28
        %v800 = vpop.permute.xlu0 %799
        %801 = vrot.lane.b32.xlu0 %v512, 28
        %v802 = vpop.permute.xlu0 %801
        %803 = vrot.lane.b32.xlu0 %v522, 28
        %v804 = vpop.permute.xlu0 %803
        %805 = vrot.lane.b32.xlu0 %v536, 28
        %v806 = vpop.permute.xlu0 %805
        %807 = vrot.lane.b32.xlu0 %v546, 28
        %v808 = vpop.permute.xlu0 %807
        %809 = vrot.lane.b32.xlu0 %v560, 28
        %v810 = vpop.permute.xlu0 %809
        %811 = vrot.lane.b32.xlu0 %v570, 28
        %v812 = vpop.permute.xlu0 %811
        %813 = vrot.lane.b32.xlu0 %v584, 28
        %v814 = vpop.permute.xlu0 %813
        %815 = vrot.lane.b32.xlu0 %v594, 28
        %v816 = vpop.permute.xlu0 %815
        %817 = vrot.lane.b32.xlu0 %v608, 28
        %v818 = vpop.permute.xlu0 %817
        %819 = vrot.lane.b32.xlu0 %v618, 28
        %v820 = vpop.permute.xlu0 %819
        %821 = vrot.lane.b32.xlu0 %v697, 28
        %v822 = vpop.permute.xlu0 %821
        %823 = vrot.lane.b32.xlu0 %v707, 28
        %v824 = vpop.permute.xlu0 %823
        %825 = vrot.lane.b32.xlu0 %v786, 28
        %v826 = vpop.permute.xlu0 %825
        %827 = vrot.lane.b32.xlu0 %v796, 28
        %v828 = vpop.permute.xlu0 %827
        %vm845 = vcmask 257248
        %846 = vst.msk [vmem:[#allocation2] sm:$0xf] %vm845, %v798
        %847 = vst.msk [vmem:[#allocation2 + $0x4] sm:$0xf] %vm845, %v800
        %848 = vst.msk [vmem:[#allocation2 + $0x8] sm:$0xf] %vm845, %v802
        %849 = vst.msk [vmem:[#allocation2 + $0xc] sm:$0xf] %vm845, %v804
        %850 = vst.msk [vmem:[#allocation2 + $0x10] sm:$0xf] %vm845, %v806
        %851 = vst.msk [vmem:[#allocation2 + $0x14] sm:$0xf] %vm845, %v808
        %852 = vst.msk [vmem:[#allocation2 + $0x18] sm:$0xf] %vm845, %v810
        %853 = vst.msk [vmem:[#allocation2 + $0x1c] sm:$0xf] %vm845, %v812
        %854 = vst.msk [vmem:[#allocation2 + $0x20] sm:$0xf] %vm845, %v814
        %855 = vst.msk [vmem:[#allocation2 + $0x24] sm:$0xf] %vm845, %v816
        %856 = vst.msk [vmem:[#allocation2 + $0x28] sm:$0xf] %vm845, %v818
        %857 = vst.msk [vmem:[#allocation2 + $0x2c] sm:$0xf] %vm845, %v820
        %858 = vst.msk [vmem:[#allocation2 + $0x30] sm:$0xf] %vm845, %v822
        %859 = vst.msk [vmem:[#allocation2 + $0x34] sm:$0xf] %vm845, %v824
        %860 = vst.msk [vmem:[#allocation2 + $0x38] sm:$0xf] %vm845, %v826
        %861 = vst.msk [vmem:[#allocation2 + $0x3c] sm:$0xf] %vm845, %v828
        %vm872 = vcmask 1042432
        %vm873 = vcmask 1046532
        %vm874 = vmor %vm872, %vm873
        %v875 = vrot.slane %v229, 5
        %v876 = vrot.slane %v875, 4
        %v877 = vrot.slane %v230, 5
        %v878 = vsel %vm874, %v876, %v877
        %v879 = vrot.slane %v877, 4
        %v880 = vrot.slane %v231, 5
        %v881 = vsel %vm874, %v879, %v880
        %v882 = vrot.slane %v232, 5
        %v883 = vrot.slane %v882, 4
        %v884 = vrot.slane %v233, 5
        %v885 = vsel %vm874, %v883, %v884
        %v886 = vrot.slane %v884, 4
        %v887 = vrot.slane %v234, 5
        %v888 = vsel %vm874, %v886, %v887
        %v889 = vrot.slane %v235, 5
        %v890 = vrot.slane %v889, 4
        %v891 = vrot.slane %v236, 5
        %v892 = vsel %vm874, %v890, %v891
        %v893 = vrot.slane %v891, 4
        %v894 = vrot.slane %v237, 5
        %v895 = vsel %vm874, %v893, %v894
        %v896 = vrot.slane %v238, 5
        %v897 = vrot.slane %v896, 4
        %v898 = vrot.slane %v239, 5
        %v899 = vsel %vm874, %v897, %v898
        %v900 = vrot.slane %v898, 4
        %v901 = vrot.slane %v240, 5
        %v902 = vsel %vm874, %v900, %v901
        %v903 = vrot.slane %v241, 5
        %v904 = vrot.slane %v903, 4
        %v905 = vrot.slane %v242, 5
        %v906 = vsel %vm874, %v904, %v905
        %v907 = vrot.slane %v905, 4
        %v908 = vrot.slane %v243, 5
        %v909 = vsel %vm874, %v907, %v908
        %v910 = vrot.slane %v244, 5
        %v911 = vrot.slane %v910, 4
        %v912 = vrot.slane %v245, 5
        %v913 = vsel %vm874, %v911, %v912
        %v914 = vrot.slane %v912, 4
        %v915 = vrot.slane %v246, 5
        %v916 = vsel %vm874, %v914, %v915
        %v917 = vrot.slane %v247, 5
        %v918 = vrot.slane %v917, 4
        %v919 = vrot.slane %v248, 5
        %v920 = vsel %vm874, %v918, %v919
        %v921 = vrot.slane %v919, 4
        %v922 = vrot.slane %v249, 5
        %v923 = vsel %vm874, %v921, %v922
        %v924 = vrot.slane %v250, 5
        %v925 = vrot.slane %v924, 4
        %v926 = vrot.slane %v251, 5
        %v927 = vsel %vm874, %v925, %v926
        %v928 = vrot.slane %v926, 4
        %v929 = vrot.slane %v252, 5
        %v930 = vsel %vm874, %v928, %v929
        %931 = vrot.lane.b32.xlu0 %v878, 8
        %v932 = vpop.permute.xlu0 %931
        %933 = vrot.lane.b32.xlu0 %v881, 8
        %v934 = vpop.permute.xlu0 %933
        %935 = vrot.lane.b32.xlu0 %v885, 8
        %v936 = vpop.permute.xlu0 %935
        %937 = vrot.lane.b32.xlu0 %v888, 8
        %v938 = vpop.permute.xlu0 %937
        %939 = vrot.lane.b32.xlu0 %v892, 8
        %v940 = vpop.permute.xlu0 %939
        %941 = vrot.lane.b32.xlu0 %v895, 8
        %v942 = vpop.permute.xlu0 %941
        %943 = vrot.lane.b32.xlu0 %v899, 8
        %v944 = vpop.permute.xlu0 %943
        %945 = vrot.lane.b32.xlu0 %v902, 8
        %v946 = vpop.permute.xlu0 %945
        %947 = vrot.lane.b32.xlu0 %v906, 8
        %v948 = vpop.permute.xlu0 %947
        %949 = vrot.lane.b32.xlu0 %v909, 8
        %v950 = vpop.permute.xlu0 %949
        %951 = vrot.lane.b32.xlu0 %v913, 8
        %v952 = vpop.permute.xlu0 %951
        %953 = vrot.lane.b32.xlu0 %v916, 8
        %v954 = vpop.permute.xlu0 %953
        %955 = vrot.lane.b32.xlu0 %v920, 8
        %v956 = vpop.permute.xlu0 %955
        %957 = vrot.lane.b32.xlu0 %v923, 8
        %v958 = vpop.permute.xlu0 %957
        %959 = vrot.lane.b32.xlu0 %v927, 8
        %v960 = vpop.permute.xlu0 %959
        %961 = vrot.lane.b32.xlu0 %v930, 8
        %v962 = vpop.permute.xlu0 %961
        %vm979 = vcmask 93248
        %980 = vst.msk [vmem:[#allocation2] sm:$0xf] %vm979, %v932
        %981 = vst.msk [vmem:[#allocation2 + $0x4] sm:$0xf] %vm979, %v934
        %982 = vst.msk [vmem:[#allocation2 + $0x8] sm:$0xf] %vm979, %v936
        %983 = vst.msk [vmem:[#allocation2 + $0xc] sm:$0xf] %vm979, %v938
        %984 = vst.msk [vmem:[#allocation2 + $0x10] sm:$0xf] %vm979, %v940
        %985 = vst.msk [vmem:[#allocation2 + $0x14] sm:$0xf] %vm979, %v942
        %986 = vst.msk [vmem:[#allocation2 + $0x18] sm:$0xf] %vm979, %v944
        %987 = vst.msk [vmem:[#allocation2 + $0x1c] sm:$0xf] %vm979, %v946
        %988 = vst.msk [vmem:[#allocation2 + $0x20] sm:$0xf] %vm979, %v948
        %989 = vst.msk [vmem:[#allocation2 + $0x24] sm:$0xf] %vm979, %v950
        %990 = vst.msk [vmem:[#allocation2 + $0x28] sm:$0xf] %vm979, %v952
        %991 = vst.msk [vmem:[#allocation2 + $0x2c] sm:$0xf] %vm979, %v954
        %992 = vst.msk [vmem:[#allocation2 + $0x30] sm:$0xf] %vm979, %v956
        %993 = vst.msk [vmem:[#allocation2 + $0x34] sm:$0xf] %vm979, %v958
        %994 = vst.msk [vmem:[#allocation2 + $0x38] sm:$0xf] %vm979, %v960
        %995 = vst.msk [vmem:[#allocation2 + $0x3c] sm:$0xf] %vm979, %v962
        %v997 = vrot.slane %v253, 5
        %v998 = vrot.slane %v997, 4
        %v999 = vrot.slane %v254, 5
        %v1000 = vsel %vm874, %v998, %v999
        %v1001 = vrot.slane %v999, 4
        %v1002 = vrot.slane %v255, 5
        %v1003 = vsel %vm874, %v1001, %v1002
        %1004 = vrot.lane.b32.xlu0 %v885, 20
        %v1005 = vpop.permute.xlu0 %1004
        %1006 = vrot.lane.b32.xlu0 %v888, 20
        %v1007 = vpop.permute.xlu0 %1006
        %1008 = vrot.lane.b32.xlu0 %v892, 20
        %v1009 = vpop.permute.xlu0 %1008
        %1010 = vrot.lane.b32.xlu0 %v895, 20
        %v1011 = vpop.permute.xlu0 %1010
        %1012 = vrot.lane.b32.xlu0 %v899, 20
        %v1013 = vpop.permute.xlu0 %1012
        %1014 = vrot.lane.b32.xlu0 %v902, 20
        %v1015 = vpop.permute.xlu0 %1014
        %1016 = vrot.lane.b32.xlu0 %v906, 20
        %v1017 = vpop.permute.xlu0 %1016
        %1018 = vrot.lane.b32.xlu0 %v909, 20
        %v1019 = vpop.permute.xlu0 %1018
        %1020 = vrot.lane.b32.xlu0 %v913, 20
        %v1021 = vpop.permute.xlu0 %1020
        %1022 = vrot.lane.b32.xlu0 %v916, 20
        %v1023 = vpop.permute.xlu0 %1022
        %1024 = vrot.lane.b32.xlu0 %v920, 20
        %v1025 = vpop.permute.xlu0 %1024
        %1026 = vrot.lane.b32.xlu0 %v923, 20
        %v1027 = vpop.permute.xlu0 %1026
        %1028 = vrot.lane.b32.xlu0 %v927, 20
        %v1029 = vpop.permute.xlu0 %1028
        %1030 = vrot.lane.b32.xlu0 %v930, 20
        %v1031 = vpop.permute.xlu0 %1030
        %1032 = vrot.lane.b32.xlu0 %v1000, 20
        %v1033 = vpop.permute.xlu0 %1032
        %1034 = vrot.lane.b32.xlu0 %v1003, 20
        %v1035 = vpop.permute.xlu0 %1034
        %vm1052 = vcmask 191648
        %1053 = vst.msk [vmem:[#allocation2] sm:$0xf] %vm1052, %v1005
        %1054 = vst.msk [vmem:[#allocation2 + $0x4] sm:$0xf] %vm1052, %v1007
        %1055 = vst.msk [vmem:[#allocation2 + $0x8] sm:$0xf] %vm1052, %v1009
        %1056 = vst.msk [vmem:[#allocation2 + $0xc] sm:$0xf] %vm1052, %v1011
        %1057 = vst.msk [vmem:[#allocation2 + $0x10] sm:$0xf] %vm1052, %v1013
        %1058 = vst.msk [vmem:[#allocation2 + $0x14] sm:$0xf] %vm1052, %v1015
        %1059 = vst.msk [vmem:[#allocation2 + $0x18] sm:$0xf] %vm1052, %v1017
        %1060 = vst.msk [vmem:[#allocation2 + $0x1c] sm:$0xf] %vm1052, %v1019
        %1061 = vst.msk [vmem:[#allocation2 + $0x20] sm:$0xf] %vm1052, %v1021
        %1062 = vst.msk [vmem:[#allocation2 + $0x24] sm:$0xf] %vm1052, %v1023
        %1063 = vst.msk [vmem:[#allocation2 + $0x28] sm:$0xf] %vm1052, %v1025
        %1064 = vst.msk [vmem:[#allocation2 + $0x2c] sm:$0xf] %vm1052, %v1027
        %1065 = vst.msk [vmem:[#allocation2 + $0x30] sm:$0xf] %vm1052, %v1029
        %1066 = vst.msk [vmem:[#allocation2 + $0x34] sm:$0xf] %vm1052, %v1031
        %1067 = vst.msk [vmem:[#allocation2 + $0x38] sm:$0xf] %vm1052, %v1033
        %1068 = vst.msk [vmem:[#allocation2 + $0x3c] sm:$0xf] %vm1052, %v1035
        %v1070 = vrot.slane %v256, 5
        %v1071 = vrot.slane %v1070, 4
        %v1072 = vrot.slane %v257, 5
        %v1073 = vsel %vm874, %v1071, %v1072
        %v1074 = vrot.slane %v1072, 4
        %v1075 = vrot.slane %v258, 5
        %v1076 = vsel %vm874, %v1074, %v1075
        %1077 = vrot.lane.b32.xlu0 %v892, 32
        %v1078 = vpop.permute.xlu0 %1077
        %1079 = vrot.lane.b32.xlu0 %v895, 32
        %v1080 = vpop.permute.xlu0 %1079
        %1081 = vrot.lane.b32.xlu0 %v899, 32
        %v1082 = vpop.permute.xlu0 %1081
        %1083 = vrot.lane.b32.xlu0 %v902, 32
        %v1084 = vpop.permute.xlu0 %1083
        %1085 = vrot.lane.b32.xlu0 %v906, 32
        %v1086 = vpop.permute.xlu0 %1085
        %1087 = vrot.lane.b32.xlu0 %v909, 32
        %v1088 = vpop.permute.xlu0 %1087
        %1089 = vrot.lane.b32.xlu0 %v913, 32
        %v1090 = vpop.permute.xlu0 %1089
        %1091 = vrot.lane.b32.xlu0 %v916, 32
        %v1092 = vpop.permute.xlu0 %1091
        %1093 = vrot.lane.b32.xlu0 %v920, 32
        %v1094 = vpop.permute.xlu0 %1093
        %1095 = vrot.lane.b32.xlu0 %v923, 32
        %v1096 = vpop.permute.xlu0 %1095
        %1097 = vrot.lane.b32.xlu0 %v927, 32
        %v1098 = vpop.permute.xlu0 %1097
        %1099 = vrot.lane.b32.xlu0 %v930, 32
        %v1100 = vpop.permute.xlu0 %1099
        %1101 = vrot.lane.b32.xlu0 %v1000, 32
        %v1102 = vpop.permute.xlu0 %1101
        %1103 = vrot.lane.b32.xlu0 %v1003, 32
        %v1104 = vpop.permute.xlu0 %1103
        %1105 = vrot.lane.b32.xlu0 %v1073, 32
        %v1106 = vpop.permute.xlu0 %1105
        %1107 = vrot.lane.b32.xlu0 %v1076, 32
        %v1108 = vpop.permute.xlu0 %1107
        %vm1125 = vcmask 290048
        %1126 = vst.msk [vmem:[#allocation2] sm:$0xf] %vm1125, %v1078
        %1127 = vst.msk [vmem:[#allocation2 + $0x4] sm:$0xf] %vm1125, %v1080
        %1128 = vst.msk [vmem:[#allocation2 + $0x8] sm:$0xf] %vm1125, %v1082
        %1129 = vst.msk [vmem:[#allocation2 + $0xc] sm:$0xf] %vm1125, %v1084
        %1130 = vst.msk [vmem:[#allocation2 + $0x10] sm:$0xf] %vm1125, %v1086
        %1131 = vst.msk [vmem:[#allocation2 + $0x14] sm:$0xf] %vm1125, %v1088
        %1132 = vst.msk [vmem:[#allocation2 + $0x18] sm:$0xf] %vm1125, %v1090
        %1133 = vst.msk [vmem:[#allocation2 + $0x1c] sm:$0xf] %vm1125, %v1092
        %1134 = vst.msk [vmem:[#allocation2 + $0x20] sm:$0xf] %vm1125, %v1094
        %1135 = vst.msk [vmem:[#allocation2 + $0x24] sm:$0xf] %vm1125, %v1096
        %1136 = vst.msk [vmem:[#allocation2 + $0x28] sm:$0xf] %vm1125, %v1098
        %1137 = vst.msk [vmem:[#allocation2 + $0x2c] sm:$0xf] %vm1125, %v1100
        %1138 = vst.msk [vmem:[#allocation2 + $0x30] sm:$0xf] %vm1125, %v1102
        %1139 = vst.msk [vmem:[#allocation2 + $0x34] sm:$0xf] %vm1125, %v1104
        %1140 = vst.msk [vmem:[#allocation2 + $0x38] sm:$0xf] %vm1125, %v1106
        %1141 = vst.msk [vmem:[#allocation2 + $0x3c] sm:$0xf] %vm1125, %v1108
        %v1142 = vld [vmem:[#allocation2] sm:$0xf]
        %v1143 = vld [vmem:[#allocation2 + $0x4] sm:$0xf]
        %v1144 = vld [vmem:[#allocation2 + $0x8] sm:$0xf]
        %v1145 = vld [vmem:[#allocation2 + $0xc] sm:$0xf]
        %v1146 = vld [vmem:[#allocation2 + $0x10] sm:$0xf]
        %v1147 = vld [vmem:[#allocation2 + $0x14] sm:$0xf]
        %v1148 = vld [vmem:[#allocation2 + $0x18] sm:$0xf]
        %v1149 = vld [vmem:[#allocation2 + $0x1c] sm:$0xf]
        %v1150 = vld [vmem:[#allocation2 + $0x20] sm:$0xf]
        %v1151 = vld [vmem:[#allocation2 + $0x24] sm:$0xf]
        %v1152 = vld [vmem:[#allocation2 + $0x28] sm:$0xf]
        %v1153 = vld [vmem:[#allocation2 + $0x2c] sm:$0xf]
        %v1154 = vld [vmem:[#allocation2 + $0x30] sm:$0xf]
        %v1155 = vld [vmem:[#allocation2 + $0x34] sm:$0xf]
        %v1156 = vld [vmem:[#allocation2 + $0x38] sm:$0xf]
        %v1157 = vld [vmem:[#allocation2 + $0x3c] sm:$0xf]
        %v1158 = vld [vmem:[%s219] sm:$0xf]
        %v1159 = vld [vmem:[%s219 + $0x4] sm:$0xf]
        %v1160 = vld [vmem:[%s219 + $0x8] sm:$0xf]
        %v1161 = vld [vmem:[%s219 + $0xc] sm:$0xf]
        %v1162 = vld [vmem:[%s219 + $0x10] sm:$0x3]
        %v1179 = vunpack.c.l.b16 %v1142
        %v1180 = vunpack.c.l.b16 %v1143
        %v1181 = vunpack.c.l.b16 %v1144
        %v1182 = vunpack.c.l.b16 %v1145
        %v1183 = vunpack.c.l.b16 %v1146
        %v1184 = vunpack.c.l.b16 %v1147
        %v1185 = vunpack.c.l.b16 %v1148
        %v1186 = vunpack.c.l.b16 %v1149
        %v1187 = vunpack.c.l.b16 %v1150
        %v1188 = vunpack.c.l.b16 %v1151
        %v1189 = vunpack.c.l.b16 %v1152
        %v1190 = vunpack.c.l.b16 %v1153
        %v1191 = vunpack.c.l.b16 %v1154
        %v1192 = vunpack.c.l.b16 %v1155
        %v1193 = vunpack.c.l.b16 %v1156
        %v1194 = vunpack.c.l.b16 %v1157
        %v1195 = vpack.c.b16 %v1180, %v1179
        %v1196 = vpack.c.b16 %v1182, %v1181
        %v1197 = vpack.c.b16 %v1184, %v1183
        %v1198 = vpack.c.b16 %v1186, %v1185
        %v1199 = vpack.c.b16 %v1188, %v1187
        %v1200 = vpack.c.b16 %v1190, %v1189
        %v1201 = vpack.c.b16 %v1192, %v1191
        %v1202 = vpack.c.b16 %v1194, %v1193
        %v1208 = vunpack.c.l.b16 %v1158
        %v1209 = vunpack.c.l.b16 %v1159
        %v1210 = vunpack.c.l.b16 %v1160
        %v1211 = vunpack.c.l.b16 %v1161
        %v1212 = vunpack.c.l.b16 %v1162
        %v1213 = vpack.c.b16 %v1209, %v1208
        %v1214 = vpack.c.b16 %v1211, %v1210
        %v1215 = vpack.c.b16 %v1212, %v1212
        %vm1218 = vcmask 293888
        %v1220 = vsel %vm1218, %v1195, 0
        %v1223 = vsel %vm1218, %v1196, 0
        %v1226 = vsel %vm1218, %v1197, 0
        %v1229 = vsel %vm1218, %v1198, 0
        %v1232 = vsel %vm1218, %v1199, 0
        %v1235 = vsel %vm1218, %v1200, 0
        %v1238 = vsel %vm1218, %v1201, 0
        %v1241 = vsel %vm1218, %v1202, 0
        %vm1243 = vcmask 1041408
        %v1245 = vsel %vm1243, %v1215, 0
        %1247 = vmatpush.bf16.msra.mxu0 0
        %1248 = vmatpush.bf16.msra.mxu0 0
        %1249 = vmatpush.bf16.msra.mxu0 0
        %1250 = vmatpush.bf16.msra.mxu0 0
        %1251 = vmatpush.bf16.msra.mxu0 0
        %1252 = vmatpush.bf16.msra.mxu0 %v1245
        %1253 = vmatpush.bf16.msra.mxu0 %v1214
        %1254 = vmatpush.bf16.msra.mxu0 %v1213
        %1255 = vmatmul.bf16.gmra.mxu0 %v1220
        %v1256 = vpop.f32.mrf.mxu0
        %v1257 = vadd.f32 0.0, %v1256
        %v1258 = vpop.f32.mrf.mxu0
        %v1259 = vadd.f32 0.0, %v1258
        %1260 = vmatmul.bf16.gmra.mxu0 %v1223
        %v1261 = vpop.f32.mrf.mxu0
        %v1262 = vadd.f32 0.0, %v1261
        %v1263 = vpop.f32.mrf.mxu0
        %v1264 = vadd.f32 0.0, %v1263
        %1265 = vmatmul.bf16.gmra.mxu0 %v1226
        %v1266 = vpop.f32.mrf.mxu0
        %v1267 = vadd.f32 0.0, %v1266
        %v1268 = vpop.f32.mrf.mxu0
        %v1269 = vadd.f32 0.0, %v1268
        %1270 = vmatmul.bf16.gmra.mxu0 %v1229
        %v1271 = vpop.f32.mrf.mxu0
        %v1272 = vadd.f32 0.0, %v1271
        %v1273 = vpop.f32.mrf.mxu0
        %v1274 = vadd.f32 0.0, %v1273
        %1275 = vmatmul.bf16.gmra.mxu0 %v1232
        %v1276 = vpop.f32.mrf.mxu0
        %v1277 = vadd.f32 0.0, %v1276
        %v1278 = vpop.f32.mrf.mxu0
        %v1279 = vadd.f32 0.0, %v1278
        %1280 = vmatmul.bf16.gmra.mxu0 %v1235
        %v1281 = vpop.f32.mrf.mxu0
        %v1282 = vadd.f32 0.0, %v1281
        %v1283 = vpop.f32.mrf.mxu0
        %v1284 = vadd.f32 0.0, %v1283
        %1285 = vmatmul.bf16.gmra.mxu0 %v1238
        %v1286 = vpop.f32.mrf.mxu0
        %v1287 = vadd.f32 0.0, %v1286
        %v1288 = vpop.f32.mrf.mxu0
        %v1289 = vadd.f32 0.0, %v1288
        %1290 = vmatmul.bf16.gmra.mxu0 %v1241
        %v1291 = vpop.f32.mrf.mxu0
        %v1292 = vadd.f32 0.0, %v1291
        %v1293 = vpop.f32.mrf.mxu0
        %v1294 = vadd.f32 0.0, %v1293
        %1295 = vdwg.mxu0
        %v1296 = vld [vmem:[%s222] sm:$0x1]
        %v1298 = vperm.slane %v1296, 0
        %v1300 = vadd.f32 %v1257, %v1298
        %v1301 = vadd.f32 %v1259, %v1298
        %v1302 = vadd.f32 %v1262, %v1298
        %v1303 = vadd.f32 %v1264, %v1298
        %v1304 = vadd.f32 %v1267, %v1298
        %v1305 = vadd.f32 %v1269, %v1298
        %v1306 = vadd.f32 %v1272, %v1298
        %v1307 = vadd.f32 %v1274, %v1298
        %v1308 = vadd.f32 %v1277, %v1298
        %v1309 = vadd.f32 %v1279, %v1298
        %v1310 = vadd.f32 %v1282, %v1298
        %v1311 = vadd.f32 %v1284, %v1298
        %v1312 = vadd.f32 %v1287, %v1298
        %v1313 = vadd.f32 %v1289, %v1298
        %v1314 = vadd.f32 %v1292, %v1298
        %v1315 = vadd.f32 %v1294, %v1298
        %v1316 = vmax.f32 %v1300, 0.0
        %v1317 = vmax.f32 %v1301, 0.0
        %v1318 = vmax.f32 %v1302, 0.0
        %v1319 = vmax.f32 %v1303, 0.0
        %v1320 = vmax.f32 %v1304, 0.0
        %v1321 = vmax.f32 %v1305, 0.0
        %v1322 = vmax.f32 %v1306, 0.0
        %v1323 = vmax.f32 %v1307, 0.0
        %v1324 = vmax.f32 %v1308, 0.0
        %v1325 = vmax.f32 %v1309, 0.0
        %v1326 = vmax.f32 %v1310, 0.0
        %v1327 = vmax.f32 %v1311, 0.0
        %v1328 = vmax.f32 %v1312, 0.0
        %v1329 = vmax.f32 %v1313, 0.0
        %v1330 = vmax.f32 %v1314, 0.0
        %v1331 = vmax.f32 %v1315, 0.0
        %v1332 = vpack.c.bf16 %v1316, %v1316
        %v1333 = vpack.c.bf16 %v1317, %v1317
        %v1334 = vpack.c.bf16 %v1318, %v1318
        %v1335 = vpack.c.bf16 %v1319, %v1319
        %v1336 = vpack.c.bf16 %v1320, %v1320
        %v1337 = vpack.c.bf16 %v1321, %v1321
        %v1338 = vpack.c.bf16 %v1322, %v1322
        %v1339 = vpack.c.bf16 %v1323, %v1323
        %v1340 = vpack.c.bf16 %v1324, %v1324
        %v1341 = vpack.c.bf16 %v1325, %v1325
        %v1342 = vpack.c.bf16 %v1326, %v1326
        %v1343 = vpack.c.bf16 %v1327, %v1327
        %v1344 = vpack.c.bf16 %v1328, %v1328
        %v1345 = vpack.c.bf16 %v1329, %v1329
        %v1346 = vpack.c.bf16 %v1330, %v1330
        %v1347 = vpack.c.bf16 %v1331, %v1331
        %1348 = vst [vmem:[%s210] sm:$0xf] %v1332
        %1349 = vst [vmem:[%s210 + $0x4] sm:$0xf] %v1333
        %1350 = vst [vmem:[%s210 + $0x8] sm:$0xf] %v1334
        %1351 = vst [vmem:[%s210 + $0xc] sm:$0xf] %v1335
        %1352 = vst [vmem:[%s210 + $0x10] sm:$0xf] %v1336
        %1353 = vst [vmem:[%s210 + $0x14] sm:$0xf] %v1337
        %1354 = vst [vmem:[%s210 + $0x18] sm:$0xf] %v1338
        %1355 = vst [vmem:[%s210 + $0x1c] sm:$0xf] %v1339
        %1356 = vst [vmem:[%s210 + $0x20] sm:$0xf] %v1340
        %1357 = vst [vmem:[%s210 + $0x24] sm:$0xf] %v1341
        %1358 = vst [vmem:[%s210 + $0x28] sm:$0xf] %v1342
        %1359 = vst [vmem:[%s210 + $0x2c] sm:$0xf] %v1343
        %1360 = vst [vmem:[%s210 + $0x30] sm:$0xf] %v1344
        %1361 = vst [vmem:[%s210 + $0x34] sm:$0xf] %v1345
        %1362 = vst [vmem:[%s210 + $0x38] sm:$0xf] %v1346
        %1363 = vst [vmem:[%s210 + $0x3c] sm:$0xf] %v1347
        %s1364 = sand.u32 %s126, 1
        %s1365 = scalar_lea.sflag [#allocation4], %s1364
        %s1366 = sand.u32 %s126, 1
        %s1367 = smul.addr %s1366, 64
        %s1368 = scalar_lea.vmem [#allocation3], %s1367
        // Predicated region
        $region33: #{tpu_custom_call.1} parent=31 // pred_check
          %p1369 = pneg %p136
        $region34: #{tpu_custom_call.1} parent=31 // pred_check_branch
          %1371 = sbr.rel (%p1369) target = $region36
        $region35: #{tpu_custom_call.1} parent=31 // pred_region
          %s1372 = smul.u32 8, %s24
          %1374 = vsyncadd %s1365, 0
          %s1375 = smul.addr %s1372, 2
          %s1376 = sadd.s32 %s23, %s1375
          %s1377 = smul.addr %s22, 32
          %s1378 = sadd.s32 %s1376, %s1377
          %s1379 = smul.addr %s1378, 4
          %s1380 = scalar_lea.hbm %s3, %s1379
          %s1381 = sshll.u32 %s1368, 4
          %s1382 = int_to_ptr.vmem [resolvable:$true] %s1381
          %s1383 = sshll.u32 %s1380, 4
          %s1384 = int_to_ptr.hbm [resolvable:$true] %s1383
          %1389 = dma.vmem_to_hbm [thread:$0]  %s1382, 1024, %s1384, %s1365, 64, 64, 4
        $region36: #{tpu_custom_call.1} parent=31 // pred_fallthru
          _
      $region32: #{tpu_custom_call.1} parent=5 // pred_fallthru
        _
      %p1390 = scmp.le.s32.totalorder 2, %s12
      // Predicated region
      $region37: #{tpu_custom_call.1} parent=5 // pred_check
        %p1391 = pneg %p1390
      $region38: #{tpu_custom_call.1} parent=5 // pred_check_branch
        %1393 = sbr.rel (%p1391) target = $region40
      $region39: #{tpu_custom_call.1} parent=5 // pred_region
        %s1394 = ssub.s32 %s12, 2
        // Predicated region
        $region41: #{tpu_custom_call.1} parent=39 // pred_check
          %p1395 = pneg %p142
        $region42: #{tpu_custom_call.1} parent=39 // pred_check_branch
          %1397 = sbr.rel (%p1395) target = $region44
        $region43: #{tpu_custom_call.1} parent=39 // pred_region
          %s1398 = sand.u32 %s127, 1
          %s1399 = scalar_lea.sflag [#allocation4], %s1398
          %s1400 = sand.u32 %s127, 1
          %s1401 = smul.addr %s1400, 64
          %s1402 = scalar_lea.vmem [#allocation3], %s1401
          %1404 = dma.done %s1399, 1024
        $region44: #{tpu_custom_call.1} parent=39 // pred_fallthru
          _
      $region40: #{tpu_custom_call.1} parent=5 // pred_fallthru
        _
    $region6: #{tpu_custom_call.1} parent=1 // loop_footer
      %s16 = sadd.s32 1, %s12
    $region7: #{tpu_custom_call.1} parent=1 // loop_footer_branch
      %11 = sbr.rel target = $region3
    $region8: #{tpu_custom_call.1} parent=1 // loop_exit
      _
    %1405 = vsyncpa [#allocation4], 1
    %s1406 = scalar_lea.sflag [#allocation4], 1
    %1407 = vsyncpa %s1406, 1

</llo_original>
